<compile_context>
chip_gen: v7x
topology: tpu7x:2x2x1
jax: 0.10.0
libtpu: 0.0.40
codegen_flags: <defaults>
</compile_context>

<pallas_src>
import functools

import jax
import jax.numpy as jnp
from jax import lax
from jax.experimental import pallas as pl
from jax.experimental.pallas import tpu as pltpu

_LANE = 128
_SUBLANE = 8
_H1, _H2, _H3 = 256, 128, 64
_K_BLOCK = 512                      # D_in tile for the K-reduction path
_TB_CANDIDATES = (512, 256, 128, 64, 32, 16, 8)


def _round_up(n, m):
    return ((n + m - 1) // m) * m


def _pad_axis(a, axis, target):
    pad = target - a.shape[axis]
    if pad <= 0:
        return a
    widths = [(0, 0)] * a.ndim
    widths[axis] = (0, pad)
    return jnp.pad(a, widths)


def _vmem_physical_bytes():
    try:
        return int(pltpu.get_tpu_info().vmem_capacity_bytes)
    except Exception:
        return 64 << 20             # conservative (v7x per-TC VMEM)


def _tensorcores_per_chip():
    try:
        info = pltpu.get_tpu_info()
        for name in ("num_tensorcores", "tensorcores_per_chip",
                     "num_cores", "cores_per_chip"):
            v = getattr(info, name, None)
            if isinstance(v, int) and v >= 1:
                return v
    except Exception:
        pass
    return 1


# ---------------------------------------------------------------------------
# One-time parameter preparation (cache the returned dict across calls).
# ---------------------------------------------------------------------------
def prepare_params(params, *, compute_dtype=jnp.bfloat16, k_tiled=None):
    """Cast weights to the MXU compute dtype and pad once, outside the hot path."""
    w1, b1, w2, b2, w3, b3, w4, b4 = params
    d_in = w1.shape[0]
    d_out = w4.shape[1]

    if k_tiled is None:
        # Gate layer-1 K-tiling per chip generation: resident x tile + w1
        # (double-buffered, TB_ref=256, f32 x) vs a fraction of physical VMEM.
        vmem = _vmem_physical_bytes()
        resident_ref = 2 * 256 * d_in * 4 + 2 * d_in * _H1 * 2
        k_tiled = resident_ref > (vmem * 5) // 8

    if k_tiled:
        tk = min(_K_BLOCK, _round_up(d_in, _LANE))
        d_in_p = _round_up(d_in, tk)
    else:
        tk = 0
        d_in_p = d_in

    h3p = _round_up(_H3, _LANE)                   # 64 -> 128 (MXU K dim)

    w1p = _pad_axis(w1, 0, d_in_p)                # exact zero rows
    w3p = _pad_axis(w3, 1, h3p)
    b3p = _pad_axis(b3.reshape(1, -1), 1, h3p)
    w4p = _pad_axis(w4, 0, h3p)                   # output lanes left UNPADDED

    return dict(
        w1=w1p.astype(compute_dtype), b1=b1.reshape(1, -1).astype(jnp.float32),
        w2=w2.astype(compute_dtype), b2=b2.reshape(1, -1).astype(jnp.float32),
        w3=w3p.astype(compute_dtype), b3=b3p.astype(jnp.float32),
        w4=w4p.astype(compute_dtype), b4=b4.reshape(1, -1).astype(jnp.float32),
        d_in=int(d_in), d_in_p=int(d_in_p), d_out=int(d_out), h3p=int(h3p),
        k_tiled=bool(k_tiled), tk=int(tk), compute_dtype=compute_dtype)


# ---------------------------------------------------------------------------
# Kernels
# ---------------------------------------------------------------------------
def _mlp_kernel(x_ref, w1_ref, b1_ref, w2_ref, b2_ref, w3_ref, b3_ref,
                w4_ref, b4_ref, o_ref, *, compute_dtype):
    """Fused 4-layer MLP, whole D_in per block (eval-mode dropout = identity)."""
    x = x_ref[...]
    if x.dtype != compute_dtype:
        x = x.astype(compute_dtype)
    h = jnp.dot(x, w1_ref[...], preferred_element_type=jnp.float32)
    h = jnp.maximum(h + b1_ref[...], 0.0).astype(compute_dtype)
    h = jnp.dot(h, w2_ref[...], preferred_element_type=jnp.float32)
    h = jnp.maximum(h + b2_ref[...], 0.0).astype(compute_dtype)
    h = jnp.dot(h, w3_ref[...], preferred_element_type=jnp.float32)
    h = jnp.maximum(h + b3_ref[...], 0.0).astype(compute_dtype)
    out = jnp.dot(h, w4_ref[...], preferred_element_type=jnp.float32)
    o_ref[...] = (out + b4_ref[...]).astype(o_ref.dtype)


def _mlp_kernel_ktiled(x_ref, w1_ref, b1_ref, w2_ref, b2_ref, w3_ref, b3_ref,
                       w4_ref, b4_ref, o_ref, acc_ref, *,
                       compute_dtype, d_in, tk):
    """Layer-1 K-reduction over D_in tiles; layers 2-4 + store on the last step."""
    k = pl.program_id(1)

    @pl.when(k == 0)
    def _():
        acc_ref[...] = jnp.zeros_like(acc_ref)

    x = x_ref[...]
    if x.dtype != compute_dtype:
        x = x.astype(compute_dtype)
    if d_in % tk != 0:
        # Partial trailing K block: zero the out-of-range columns (w1's rows are
        # zero-padded, so the product contribution becomes exactly zero).
        col = lax.broadcasted_iota(jnp.int32, x.shape, 1) + k * tk
        x = jnp.where(col < d_in, x, jnp.zeros_like(x))
    acc_ref[...] += jnp.dot(x, w1_ref[...], preferred_element_type=jnp.float32)

    @pl.when(k == pl.num_programs(1) - 1)
    def _():
        h = jnp.maximum(acc_ref[...] + b1_ref[...], 0.0).astype(compute_dtype)
        h = jnp.dot(h, w2_ref[...], preferred_element_type=jnp.float32)
        h = jnp.maximum(h + b2_ref[...], 0.0).astype(compute_dtype)
        h = jnp.dot(h, w3_ref[...], preferred_element_type=jnp.float32)
        h = jnp.maximum(h + b3_ref[...], 0.0).astype(compute_dtype)
        out = jnp.dot(h, w4_ref[...], preferred_element_type=jnp.float32)
        o_ref[...] = (out + b4_ref[...]).astype(o_ref.dtype)


# ---------------------------------------------------------------------------
# Forward wrapper
# ---------------------------------------------------------------------------
def _choose_tb(batch, fits):
    """Largest tile that fits VMEM while minimizing batch padding (total work)."""
    best = None
    for tb in _TB_CANDIDATES:
        if not fits(tb):
            continue
        bp = _round_up(max(batch, 1), tb)
        key = (bp, -tb)
        if best is None or key < best[0]:
            best = (key, tb)
    return _TB_CANDIDATES[-1] if best is None else best[1]


def voice_cloning_forward(x, prepared):
    """x: [B, ...] (f32 or bf16) -> [B, D_out] float32 (eval-mode dropout)."""
    p = prepared
    compute_dtype = p["compute_dtype"]
    d_in, d_in_p, d_out, h3p = p["d_in"], p["d_in_p"], p["d_out"], p["h3p"]
    k_tiled, tk = p["k_tiled"], p["tk"]

    B = x.shape[0]
    x2d = x.reshape(B, -1)                       # free metadata reshape
    assert x2d.shape[1] == d_in, (x2d.shape, d_in)
    xbytes = jnp.dtype(x2d.dtype).itemsize
    cbytes = jnp.dtype(compute_dtype).itemsize

    weights = (p["w1"], p["b1"], p["w2"], p["b2"], p["w3"], p["b3"],
               p["w4"], p["b4"])
    wbytes = sum(int(w.size) * jnp.dtype(w.dtype).itemsize for w in weights)

    vmem_phys = _vmem_physical_bytes()
    vmem_cap = min(vmem_phys * 3 // 4, 96 << 20)

    def resident(tb):
        inter = tb * (_H1 + _H2 + h3p) * (4 + cbytes) + tb * d_out * 4
        if k_tiled:
            r = (2 * tb * tk * xbytes                       # x K-tiles (dbl-buf)
                 + 2 * tk * _H1 * cbytes                    # w1 K-tiles (dbl-buf)
                 + (wbytes - d_in_p * _H1 * cbytes)         # rest of the weights
                 + tb * _H1 * 4                             # f32 accumulator
                 + 2 * tb * d_out * 4 + inter)
        else:
            r = (2 * tb * d_in * xbytes                     # x tiles (dbl-buf)
                 + wbytes                                   # weights (single-buf)
                 + 2 * tb * d_out * 4 + inter)
        return r + (2 << 20)

    TB = _choose_tb(B, lambda tb: resident(tb) <= vmem_cap)
    Bp = _round_up(max(B, 1), TB)
    xp = _pad_axis(x2d, 0, Bp)
    nb = Bp // TB

    # Generous limit (also covers the double-buffered-weights fallback).
    vmem_limit = int(min(max(resident(TB) + wbytes + (8 << 20), 32 << 20),
                         vmem_phys * 15 // 16))

    flops = 2 * Bp * (d_in * _H1 + _H1 * _H2 + _H2 * h3p + h3p * d_out)
    bytes_accessed = Bp * d_in * xbytes + wbytes + Bp * d_out * 4
    cost = pl.CostEstimate(flops=int(flops), transcendentals=0,
                           bytes_accessed=int(bytes_accessed))

    multi_tc = _tensorcores_per_chip() > 1
    batch_sem_fast = pltpu.CORE_PARALLEL if multi_tc else pltpu.PARALLEL

    if k_tiled:
        nk = d_in_p // tk
        grid = (nb, nk)
        kernel = functools.partial(_mlp_kernel_ktiled,
                                   compute_dtype=compute_dtype, d_in=d_in, tk=tk)
        scratch = [pltpu.VMEM((TB, _H1), jnp.float32)]
        out_spec = pl.BlockSpec((TB, d_out), lambda i, k: (i, 0))
        sem_fast = (batch_sem_fast, pltpu.ARBITRARY)
        sem_safe = (pltpu.PARALLEL, pltpu.ARBITRARY)

        def build_in_specs(pipe):
            def whole(a):
                if pipe is None:
                    return pl.BlockSpec(a.shape, lambda i, k: (0, 0))
                return pl.BlockSpec(a.shape, lambda i, k: (0, 0),
                                    pipeline_mode=pipe)
            return [pl.BlockSpec((TB, tk), lambda i, k: (i, k)),       # x
                    pl.BlockSpec((tk, _H1), lambda i, k: (k, 0)),      # w1 (K-blocked)
                    whole(p["b1"]), whole(p["w2"]), whole(p["b2"]),
                    whole(p["w3"]), whole(p["b3"]),
                    whole(p["w4"]), whole(p["b4"])]
    else:
        grid = (nb,)
        kernel = functools.partial(_mlp_kernel, compute_dtype=compute_dtype)
        scratch = []
        out_spec = pl.BlockSpec((TB, d_out), lambda i: (i, 0))
        sem_fast = (batch_sem_fast,)
        sem_safe = (pltpu.PARALLEL,)

        def build_in_specs(pipe):
            def whole(a):
                if pipe is None:
                    return pl.BlockSpec(a.shape, lambda i: (0, 0))
                return pl.BlockSpec(a.shape, lambda i: (0, 0),
                                    pipeline_mode=pipe)
            return [pl.BlockSpec((TB, d_in), lambda i: (i, 0)),        # x
                    whole(p["w1"]), whole(p["b1"]),
                    whole(p["w2"]), whole(p["b2"]),
                    whole(p["w3"]), whole(p["b3"]),
                    whole(p["w4"]), whole(p["b4"])]

    sems = [sem_fast] + ([sem_safe] if sem_safe != sem_fast else [])
    attempts = [(s, pipe) for pipe in (pl.Buffered(1), None) for s in sems]

    out, last_err = None, None
    for sem, pipe in attempts:
        try:
            out = pl.pallas_call(
                kernel,
                out_shape=jax.ShapeDtypeStruct((Bp, d_out), jnp.float32),
                grid=grid,
                in_specs=build_in_specs(pipe),
                out_specs=out_spec,
                scratch_shapes=scratch,
                compiler_params=pltpu.CompilerParams(
                    dimension_semantics=sem,
                    vmem_limit_bytes=vmem_limit),
                cost_estimate=cost,
            )(xp, *weights)
            out = jax.block_until_ready(out)
            break
        except Exception as err:      # fall back (e.g. Buffered/CORE_PARALLEL)
            last_err = err
            out = None
    if out is None:
        raise last_err
    return out[:B]


# ---------------------------------------------------------------------------
# Init + reference
# ---------------------------------------------------------------------------
def init_params(key, input_dim, output_dim):
    """Deterministic init mirroring nn.Linear's U(-1/sqrt(fan_in), 1/sqrt(fan_in))."""
    dims = [(input_dim, _H1), (_H1, _H2), (_H2, _H3), (_H3, output_dim)]
    params = []
    for fan_in, fan_out in dims:
        key, kw, kb = jax.random.split(key, 3)
        bound = 1.0 / jnp.sqrt(jnp.float32(fan_in))
        w = jax.random.uniform(kw, (fan_in, fan_out), jnp.float32, -bound, bound)
        b = jax.random.uniform(kb, (1, fan_out), jnp.float32, -bound, bound)
        params += [w, b]
    return tuple(params)


def _ref_forward(x, params, compute_dtype=jnp.bfloat16):
    """Plain-JAX reference with the same dtype recipe (eval-mode dropout)."""
    h = x.reshape(x.shape[0], -1).astype(compute_dtype)
    w1, b1, w2, b2, w3, b3, w4, b4 = params
    for w, b in ((w1, b1), (w2, b2), (w3, b3)):
        h = jnp.dot(h, w.astype(compute_dtype), preferred_element_type=jnp.float32)
        h = jnp.maximum(h + b.reshape(1, -1).astype(jnp.float32), 0.0).astype(compute_dtype)
    return (jnp.dot(h, w4.astype(compute_dtype), preferred_element_type=jnp.float32)
            + b4.reshape(1, -1).astype(jnp.float32))


if __name__ == "__main__":
    key = jax.random.PRNGKey(0)
    k_x1, k_p1, k_x2, k_p2 = jax.random.split(key, 4)

    # ---- Case 1: module-spec shapes (f32 input, single-block-K path) --------
    B1, C1, T1 = 2, 4, 16                         # flatten -> D_in = 64
    out_dim1 = 32
    x1 = jax.random.normal(k_x1, (B1, C1, T1), dtype=jnp.float32)
    params1 = init_params(k_p1, C1 * T1, out_dim1)
    prepared1 = prepare_params(params1)           # one-time cast/pad, cached
    y1 = jax.block_until_ready(voice_cloning_forward(x1, prepared1))
    assert y1.shape == (B1, out_dim1)
    assert jnp.allclose(y1, _ref_forward(x1, params1), atol=2e-3, rtol=2e-3)

    # ---- Case 2: bf16 activations + forced K-reduction path (v7x VMEM case) -
    B2, D_in2, out_dim2 = 16, 640, 32
    x2 = jax.random.normal(k_x2, (B2, D_in2), dtype=jnp.float32).astype(jnp.bfloat16)
    params2 = init_params(k_p2, D_in2, out_dim2)
    prepared2 = prepare_params(params2, k_tiled=True)
    y2 = jax.block_until_ready(voice_cloning_forward(x2, prepared2))
    assert y2.shape == (B2, out_dim2)
    assert jnp.allclose(y2, _ref_forward(x2, params2), atol=3e-2, rtol=3e-2)

    print("KERNEL_OK")
</pallas_src>

<mosaic_0001>
module attributes {stable_mosaic.version = 11 : i64} {
  func.func @_mlp_kernel(%arg0: i32, %arg1: memref<8x64xf32, #tpu.memory_space<vmem>>, %arg2: memref<64x256xbf16, #tpu.memory_space<vmem>>, %arg3: memref<1x256xf32, #tpu.memory_space<vmem>>, %arg4: memref<256x128xbf16, #tpu.memory_space<vmem>>, %arg5: memref<1x128xf32, #tpu.memory_space<vmem>>, %arg6: memref<128x128xbf16, #tpu.memory_space<vmem>>, %arg7: memref<1x128xf32, #tpu.memory_space<vmem>>, %arg8: memref<128x32xbf16, #tpu.memory_space<vmem>>, %arg9: memref<1x32xf32, #tpu.memory_space<vmem>>, %arg10: memref<8x32xf32, #tpu.memory_space<vmem>>) attributes {dimension_semantics = [#tpu.dimension_semantics<parallel>], iteration_bounds = array<i64: 1>, scalar_prefetch = 0 : i64, scratch_operands = 0 : i64, tpu.core_type = #tpu.core_type<tc>, window_params = [{transform_indices = @transform_0, window_bounds = array<i64: 8, 64>}, {pipeline_mode = #tpu.pipeline_mode<synchronous>, transform_indices = @transform_1, window_bounds = array<i64: 64, 256>}, {pipeline_mode = #tpu.pipeline_mode<synchronous>, transform_indices = @transform_2, window_bounds = array<i64: 1, 256>}, {pipeline_mode = #tpu.pipeline_mode<synchronous>, transform_indices = @transform_3, window_bounds = array<i64: 256, 128>}, {pipeline_mode = #tpu.pipeline_mode<synchronous>, transform_indices = @transform_4, window_bounds = array<i64: 1, 128>}, {pipeline_mode = #tpu.pipeline_mode<synchronous>, transform_indices = @transform_5, window_bounds = array<i64: 128, 128>}, {pipeline_mode = #tpu.pipeline_mode<synchronous>, transform_indices = @transform_6, window_bounds = array<i64: 1, 128>}, {pipeline_mode = #tpu.pipeline_mode<synchronous>, transform_indices = @transform_7, window_bounds = array<i64: 128, 32>}, {pipeline_mode = #tpu.pipeline_mode<synchronous>, transform_indices = @transform_8, window_bounds = array<i64: 1, 32>}, {transform_indices = @transform_9, window_bounds = array<i64: 8, 32>}]} {
    %c0 = arith.constant 0 : index
    %c0_0 = arith.constant 0 : index
    %0 = vector.load %arg1[%c0, %c0_0] : memref<8x64xf32, #tpu.memory_space<vmem>>, vector<8x64xf32>
    %1 = arith.truncf %0 : vector<8x64xf32> to vector<8x64xbf16>
    %c0_1 = arith.constant 0 : index
    %c0_2 = arith.constant 0 : index
    %2 = vector.load %arg2[%c0_1, %c0_2] : memref<64x256xbf16, #tpu.memory_space<vmem>>, vector<64x256xbf16>
    %cst = arith.constant dense<0.000000e+00> : vector<8x256xf32>
    %3 = tpu.matmul %1, %2, %cst {dimension_numbers = #tpu.dot_dimension_numbers<[1], [0], [0], [1], [0, 0, 1, 1], [], []>} : vector<8x64xbf16>, vector<64x256xbf16>, vector<8x256xf32> -> vector<8x256xf32>
    %c0_3 = arith.constant 0 : index
    %c0_4 = arith.constant 0 : index
    %4 = vector.load %arg3[%c0_3, %c0_4] : memref<1x256xf32, #tpu.memory_space<vmem>>, vector<1x256xf32>
    %5 = vector.broadcast %4 : vector<1x256xf32> to vector<8x256xf32>
    %6 = arith.addf %3, %5 : vector<8x256xf32>
    %cst_5 = arith.constant 0.000000e+00 : f32
    %7 = vector.broadcast %cst_5 : f32 to vector<8x256xf32>
    %8 = arith.maximumf %6, %7 : vector<8x256xf32>
    %9 = arith.truncf %8 : vector<8x256xf32> to vector<8x256xbf16>
    %c0_6 = arith.constant 0 : index
    %c0_7 = arith.constant 0 : index
    %10 = vector.load %arg4[%c0_6, %c0_7] : memref<256x128xbf16, #tpu.memory_space<vmem>>, vector<256x128xbf16>
    %cst_8 = arith.constant dense<0.000000e+00> : vector<8x128xf32>
    %11 = tpu.matmul %9, %10, %cst_8 {dimension_numbers = #tpu.dot_dimension_numbers<[1], [0], [0], [1], [0, 0, 1, 1], [], []>} : vector<8x256xbf16>, vector<256x128xbf16>, vector<8x128xf32> -> vector<8x128xf32>
    %c0_9 = arith.constant 0 : index
    %c0_10 = arith.constant 0 : index
    %12 = vector.load %arg5[%c0_9, %c0_10] : memref<1x128xf32, #tpu.memory_space<vmem>>, vector<1x128xf32>
    %13 = vector.broadcast %12 : vector<1x128xf32> to vector<8x128xf32>
    %14 = arith.addf %11, %13 : vector<8x128xf32>
    %cst_11 = arith.constant 0.000000e+00 : f32
    %15 = vector.broadcast %cst_11 : f32 to vector<8x128xf32>
    %16 = arith.maximumf %14, %15 : vector<8x128xf32>
    %17 = arith.truncf %16 : vector<8x128xf32> to vector<8x128xbf16>
    %c0_12 = arith.constant 0 : index
    %c0_13 = arith.constant 0 : index
    %18 = vector.load %arg6[%c0_12, %c0_13] : memref<128x128xbf16, #tpu.memory_space<vmem>>, vector<128x128xbf16>
    %cst_14 = arith.constant dense<0.000000e+00> : vector<8x128xf32>
    %19 = tpu.matmul %17, %18, %cst_14 {dimension_numbers = #tpu.dot_dimension_numbers<[1], [0], [0], [1], [0, 0, 1, 1], [], []>} : vector<8x128xbf16>, vector<128x128xbf16>, vector<8x128xf32> -> vector<8x128xf32>
    %c0_15 = arith.constant 0 : index
    %c0_16 = arith.constant 0 : index
    %20 = vector.load %arg7[%c0_15, %c0_16] : memref<1x128xf32, #tpu.memory_space<vmem>>, vector<1x128xf32>
    %21 = vector.broadcast %20 : vector<1x128xf32> to vector<8x128xf32>
    %22 = arith.addf %19, %21 : vector<8x128xf32>
    %cst_17 = arith.constant 0.000000e+00 : f32
    %23 = vector.broadcast %cst_17 : f32 to vector<8x128xf32>
    %24 = arith.maximumf %22, %23 : vector<8x128xf32>
    %25 = arith.truncf %24 : vector<8x128xf32> to vector<8x128xbf16>
    %c0_18 = arith.constant 0 : index
    %c0_19 = arith.constant 0 : index
    %26 = vector.load %arg8[%c0_18, %c0_19] : memref<128x32xbf16, #tpu.memory_space<vmem>>, vector<128x32xbf16>
    %cst_20 = arith.constant dense<0.000000e+00> : vector<8x32xf32>
    %27 = tpu.matmul %25, %26, %cst_20 {dimension_numbers = #tpu.dot_dimension_numbers<[1], [0], [0], [1], [0, 0, 1, 1], [], []>} : vector<8x128xbf16>, vector<128x32xbf16>, vector<8x32xf32> -> vector<8x32xf32>
    %c0_21 = arith.constant 0 : index
    %c0_22 = arith.constant 0 : index
    %28 = vector.load %arg9[%c0_21, %c0_22] : memref<1x32xf32, #tpu.memory_space<vmem>>, vector<1x32xf32>
    %29 = vector.broadcast %28 : vector<1x32xf32> to vector<8x32xf32>
    %30 = arith.addf %27, %29 : vector<8x32xf32>
    %c0_23 = arith.constant 0 : index
    %c0_24 = arith.constant 0 : index
    %31 = vector.load %arg10[%c0_23, %c0_24] : memref<8x32xf32, #tpu.memory_space<vmem>>, vector<8x32xf32>
    tpu.vector_store %arg10[%c0_23, %c0_24], %30 {strides = array<i32>} : memref<8x32xf32, #tpu.memory_space<vmem>>, vector<8x32xf32>,
    return
  }
  func.func @transform_0(%arg0: i32) -> (i32, i32) {
    %c0_i32 = arith.constant 0 : i32
    %c0_i32_0 = arith.constant 0 : i32
    return %arg0, %c0_i32 : i32, i32
  }
  func.func @transform_1(%arg0: i32) -> (i32, i32) {
    %c0_i32 = arith.constant 0 : i32
    %c0_i32_0 = arith.constant 0 : i32
    %c0_i32_1 = arith.constant 0 : i32
    return %c0_i32, %c0_i32_0 : i32, i32
  }
  func.func @transform_2(%arg0: i32) -> (i32, i32) {
    %c0_i32 = arith.constant 0 : i32
    %c0_i32_0 = arith.constant 0 : i32
    %c0_i32_1 = arith.constant 0 : i32
    return %c0_i32, %c0_i32_0 : i32, i32
  }
  func.func @transform_3(%arg0: i32) -> (i32, i32) {
    %c0_i32 = arith.constant 0 : i32
    %c0_i32_0 = arith.constant 0 : i32
    %c0_i32_1 = arith.constant 0 : i32
    return %c0_i32, %c0_i32_0 : i32, i32
  }
  func.func @transform_4(%arg0: i32) -> (i32, i32) {
    %c0_i32 = arith.constant 0 : i32
    %c0_i32_0 = arith.constant 0 : i32
    %c0_i32_1 = arith.constant 0 : i32
    return %c0_i32, %c0_i32_0 : i32, i32
  }
  func.func @transform_5(%arg0: i32) -> (i32, i32) {
    %c0_i32 = arith.constant 0 : i32
    %c0_i32_0 = arith.constant 0 : i32
    %c0_i32_1 = arith.constant 0 : i32
    return %c0_i32, %c0_i32_0 : i32, i32
  }
  func.func @transform_6(%arg0: i32) -> (i32, i32) {
    %c0_i32 = arith.constant 0 : i32
    %c0_i32_0 = arith.constant 0 : i32
    %c0_i32_1 = arith.constant 0 : i32
    return %c0_i32, %c0_i32_0 : i32, i32
  }
  func.func @transform_7(%arg0: i32) -> (i32, i32) {
    %c0_i32 = arith.constant 0 : i32
    %c0_i32_0 = arith.constant 0 : i32
    %c0_i32_1 = arith.constant 0 : i32
    return %c0_i32, %c0_i32_0 : i32, i32
  }
  func.func @transform_8(%arg0: i32) -> (i32, i32) {
    %c0_i32 = arith.constant 0 : i32
    %c0_i32_0 = arith.constant 0 : i32
    %c0_i32_1 = arith.constant 0 : i32
    return %c0_i32, %c0_i32_0 : i32, i32
  }
  func.func @transform_9(%arg0: i32) -> (i32, i32) {
    %c0_i32 = arith.constant 0 : i32
    %c0_i32_0 = arith.constant 0 : i32
    return %arg0, %c0_i32 : i32, i32
  }
}

module attributes {stable_mosaic.version = 11 : i64} {
  func.func @_mlp_kernel(%arg0: i32, %arg1: memref<8x64xf32, #tpu.memory_space<vmem>>, %arg2: memref<64x256xbf16, #tpu.memory_space<vmem>>, %arg3: memref<1x256xf32, #tpu.memory_space<vmem>>, %arg4: memref<256x128xbf16, #tpu.memory_space<vmem>>, %arg5: memref<1x128xf32, #tpu.memory_space<vmem>>, %arg6: memref<128x128xbf16, #tpu.memory_space<vmem>>, %arg7: memref<1x128xf32, #tpu.memory_space<vmem>>, %arg8: memref<128x32xbf16, #tpu.memory_space<vmem>>, %arg9: memref<1x32xf32, #tpu.memory_space<vmem>>, %arg10: memref<8x32xf32, #tpu.memory_space<vmem>>) attributes {dimension_semantics = [#tpu.dimension_semantics<parallel>], iteration_bounds = array<i64: 1>, scalar_prefetch = 0 : i64, scratch_operands = 0 : i64, tpu.core_type = #tpu.core_type<tc>, window_params = [{transform_indices = @transform_0, window_bounds = array<i64: 8, 64>}, {pipeline_mode = #tpu.pipeline_mode<synchronous>, transform_indices = @transform_1, window_bounds = array<i64: 64, 256>}, {pipeline_mode = #tpu.pipeline_mode<synchronous>, transform_indices = @transform_2, window_bounds = array<i64: 1, 256>}, {pipeline_mode = #tpu.pipeline_mode<synchronous>, transform_indices = @transform_3, window_bounds = array<i64: 256, 128>}, {pipeline_mode = #tpu.pipeline_mode<synchronous>, transform_indices = @transform_4, window_bounds = array<i64: 1, 128>}, {pipeline_mode = #tpu.pipeline_mode<synchronous>, transform_indices = @transform_5, window_bounds = array<i64: 128, 128>}, {pipeline_mode = #tpu.pipeline_mode<synchronous>, transform_indices = @transform_6, window_bounds = array<i64: 1, 128>}, {pipeline_mode = #tpu.pipeline_mode<synchronous>, transform_indices = @transform_7, window_bounds = array<i64: 128, 32>}, {pipeline_mode = #tpu.pipeline_mode<synchronous>, transform_indices = @transform_8, window_bounds = array<i64: 1, 32>}, {transform_indices = @transform_9, window_bounds = array<i64: 8, 32>}]} {
    %c0 = arith.constant 0 : index
    %c0_0 = arith.constant 0 : index
    %0 = vector.load %arg1[%c0, %c0_0] : memref<8x64xf32, #tpu.memory_space<vmem>>, vector<8x64xf32>
    %1 = arith.truncf %0 : vector<8x64xf32> to vector<8x64xbf16>
    %c0_1 = arith.constant 0 : index
    %c0_2 = arith.constant 0 : index
    %2 = vector.load %arg2[%c0_1, %c0_2] : memref<64x256xbf16, #tpu.memory_space<vmem>>, vector<64x256xbf16>
    %cst = arith.constant dense<0.000000e+00> : vector<8x256xf32>
    %3 = tpu.matmul %1, %2, %cst {dimension_numbers = #tpu.dot_dimension_numbers<[1], [0], [0], [1], [0, 0, 1, 1], [], []>} : vector<8x64xbf16>, vector<64x256xbf16>, vector<8x256xf32> -> vector<8x256xf32>
    %c0_3 = arith.constant 0 : index
    %c0_4 = arith.constant 0 : index
    %4 = vector.load %arg3[%c0_3, %c0_4] : memref<1x256xf32, #tpu.memory_space<vmem>>, vector<1x256xf32>
    %5 = vector.broadcast %4 : vector<1x256xf32> to vector<8x256xf32>
    %6 = arith.addf %3, %5 : vector<8x256xf32>
    %cst_5 = arith.constant 0.000000e+00 : f32
    %7 = vector.broadcast %cst_5 : f32 to vector<8x256xf32>
    %8 = arith.maximumf %6, %7 : vector<8x256xf32>
    %9 = arith.truncf %8 : vector<8x256xf32> to vector<8x256xbf16>
    %c0_6 = arith.constant 0 : index
    %c0_7 = arith.constant 0 : index
    %10 = vector.load %arg4[%c0_6, %c0_7] : memref<256x128xbf16, #tpu.memory_space<vmem>>, vector<256x128xbf16>
    %cst_8 = arith.constant dense<0.000000e+00> : vector<8x128xf32>
    %11 = tpu.matmul %9, %10, %cst_8 {dimension_numbers = #tpu.dot_dimension_numbers<[1], [0], [0], [1], [0, 0, 1, 1], [], []>} : vector<8x256xbf16>, vector<256x128xbf16>, vector<8x128xf32> -> vector<8x128xf32>
    %c0_9 = arith.constant 0 : index
    %c0_10 = arith.constant 0 : index
    %12 = vector.load %arg5[%c0_9, %c0_10] : memref<1x128xf32, #tpu.memory_space<vmem>>, vector<1x128xf32>
    %13 = vector.broadcast %12 : vector<1x128xf32> to vector<8x128xf32>
    %14 = arith.addf %11, %13 : vector<8x128xf32>
    %cst_11 = arith.constant 0.000000e+00 : f32
    %15 = vector.broadcast %cst_11 : f32 to vector<8x128xf32>
    %16 = arith.maximumf %14, %15 : vector<8x128xf32>
    %17 = arith.truncf %16 : vector<8x128xf32> to vector<8x128xbf16>
    %c0_12 = arith.constant 0 : index
    %c0_13 = arith.constant 0 : index
    %18 = vector.load %arg6[%c0_12, %c0_13] : memref<128x128xbf16, #tpu.memory_space<vmem>>, vector<128x128xbf16>
    %cst_14 = arith.constant dense<0.000000e+00> : vector<8x128xf32>
    %19 = tpu.matmul %17, %18, %cst_14 {dimension_numbers = #tpu.dot_dimension_numbers<[1], [0], [0], [1], [0, 0, 1, 1], [], []>} : vector<8x128xbf16>, vector<128x128xbf16>, vector<8x128xf32> -> vector<8x128xf32>
    %c0_15 = arith.constant 0 : index
    %c0_16 = arith.constant 0 : index
    %20 = vector.load %arg7[%c0_15, %c0_16] : memref<1x128xf32, #tpu.memory_space<vmem>>, vector<1x128xf32>
    %21 = vector.broadcast %20 : vector<1x128xf32> to vector<8x128xf32>
    %22 = arith.addf %19, %21 : vector<8x128xf32>
    %cst_17 = arith.constant 0.000000e+00 : f32
    %23 = vector.broadcast %cst_17 : f32 to vector<8x128xf32>
    %24 = arith.maximumf %22, %23 : vector<8x128xf32>
    %25 = arith.truncf %24 : vector<8x128xf32> to vector<8x128xbf16>
    %c0_18 = arith.constant 0 : index
    %c0_19 = arith.constant 0 : index
    %26 = vector.load %arg8[%c0_18, %c0_19] : memref<128x32xbf16, #tpu.memory_space<vmem>>, vector<128x32xbf16>
    %cst_20 = arith.constant dense<0.000000e+00> : vector<8x32xf32>
    %27 = tpu.matmul %25, %26, %cst_20 {dimension_numbers = #tpu.dot_dimension_numbers<[1], [0], [0], [1], [0, 0, 1, 1], [], []>} : vector<8x128xbf16>, vector<128x32xbf16>, vector<8x32xf32> -> vector<8x32xf32>
    %c0_21 = arith.constant 0 : index
    %c0_22 = arith.constant 0 : index
    %28 = vector.load %arg9[%c0_21, %c0_22] : memref<1x32xf32, #tpu.memory_space<vmem>>, vector<1x32xf32>
    %29 = vector.broadcast %28 : vector<1x32xf32> to vector<8x32xf32>
    %30 = arith.addf %27, %29 : vector<8x32xf32>
    %c0_23 = arith.constant 0 : index
    %c0_24 = arith.constant 0 : index
    %31 = vector.load %arg10[%c0_23, %c0_24] : memref<8x32xf32, #tpu.memory_space<vmem>>, vector<8x32xf32>
    tpu.vector_store %arg10[%c0_23, %c0_24], %30 {strides = array<i32>} : memref<8x32xf32, #tpu.memory_space<vmem>>, vector<8x32xf32>,
    return
  }
  func.func @transform_0(%arg0: i32) -> (i32, i32) {
    %c0_i32 = arith.constant 0 : i32
    %c0_i32_0 = arith.constant 0 : i32
    return %arg0, %c0_i32 : i32, i32
  }
  func.func @transform_1(%arg0: i32) -> (i32, i32) {
    %c0_i32 = arith.constant 0 : i32
    %c0_i32_0 = arith.constant 0 : i32
    %c0_i32_1 = arith.constant 0 : i32
    return %c0_i32, %c0_i32_0 : i32, i32
  }
  func.func @transform_2(%arg0: i32) -> (i32, i32) {
    %c0_i32 = arith.constant 0 : i32
    %c0_i32_0 = arith.constant 0 : i32
    %c0_i32_1 = arith.constant 0 : i32
    return %c0_i32, %c0_i32_0 : i32, i32
  }
  func.func @transform_3(%arg0: i32) -> (i32, i32) {
    %c0_i32 = arith.constant 0 : i32
    %c0_i32_0 = arith.constant 0 : i32
    %c0_i32_1 = arith.constant 0 : i32
    return %c0_i32, %c0_i32_0 : i32, i32
  }
  func.func @transform_4(%arg0: i32) -> (i32, i32) {
    %c0_i32 = arith.constant 0 : i32
    %c0_i32_0 = arith.constant 0 : i32
    %c0_i32_1 = arith.constant 0 : i32
    return %c0_i32, %c0_i32_0 : i32, i32
  }
  func.func @transform_5(%arg0: i32) -> (i32, i32) {
    %c0_i32 = arith.constant 0 : i32
    %c0_i32_0 = arith.constant 0 : i32
    %c0_i32_1 = arith.constant 0 : i32
    return %c0_i32, %c0_i32_0 : i32, i32
  }
  func.func @transform_6(%arg0: i32) -> (i32, i32) {
    %c0_i32 = arith.constant 0 : i32
    %c0_i32_0 = arith.constant 0 : i32
    %c0_i32_1 = arith.constant 0 : i32
    return %c0_i32, %c0_i32_0 : i32, i32
  }
  func.func @transform_7(%arg0: i32) -> (i32, i32) {
    %c0_i32 = arith.constant 0 : i32
    %c0_i32_0 = arith.constant 0 : i32
    %c0_i32_1 = arith.constant 0 : i32
    return %c0_i32, %c0_i32_0 : i32, i32
  }
  func.func @transform_8(%arg0: i32) -> (i32, i32) {
    %c0_i32 = arith.constant 0 : i32
    %c0_i32_0 = arith.constant 0 : i32
    %c0_i32_1 = arith.constant 0 : i32
    return %c0_i32, %c0_i32_0 : i32, i32
  }
  func.func @transform_9(%arg0: i32) -> (i32, i32) {
    %c0_i32 = arith.constant 0 : i32
    %c0_i32_0 = arith.constant 0 : i32
    return %arg0, %c0_i32 : i32, i32
  }
}

</mosaic_0001>

<llo_original>
// kernel: tpu_custom_call.1
$region0: #{tpu_custom_call.1}
  #allocation0 [shape = 'u32[]', space=smem, size = 0x4, offset = 0x4, fixed_abs, tag = 'smem constant byte address 0x4 - core index']
  #allocation1 [shape = 'u32[144,128]{1,0:T(1,128)}', space=vmem, size = 0x12000, scoped, tag = 'internal scratch']
  %s0 = inlined_call_operand.vmem [shape: f32[8,64], index: 0, kind: input, shape index: {}]
  %s1 = inlined_call_operand.vmem [shape: bf16[64,256], index: 1, kind: input, shape index: {}]
  %s2 = inlined_call_operand.vmem [shape: f32[1,256], index: 2, kind: input, shape index: {}]
  %s3 = inlined_call_operand.hbm [shape: bf16[256,128], index: 3, kind: input, shape index: {}]
  %s4 = inlined_call_operand.vmem [shape: f32[1,128], index: 4, kind: input, shape index: {}]
  %s5 = inlined_call_operand.hbm [shape: bf16[128,128], index: 5, kind: input, shape index: {}]
  %s6 = inlined_call_operand.vmem [shape: f32[1,128], index: 6, kind: input, shape index: {}]
  %s7 = inlined_call_operand.vmem [shape: bf16[128,32], index: 7, kind: input, shape index: {}]
  %s8 = inlined_call_operand.vmem [shape: f32[1,32], index: 8, kind: input, shape index: {}]
  %s9 = inlined_call_operand.hbm [shape: f32[8,32], index: 9, kind: output, shape index: {}]
  %s10 = sld [smem:[#allocation0]]
  $region54: #{tpu_custom_call.1} parent=0
    _
  %s12 = ssub.s32 1, %s10
  %s13 = scalar_select 0, %s12, %s10
  $region1: #{tpu_custom_call.1} parent=0
    #allocation2 [shape = 'u8[65536]{0}', space=vmem, size = 0x10000, scoped, tag = 'input window, operand 3, single buffered']
    #allocation3 [shape = 's32[1]{0}', space=sflag, size = 0x4, scoped, tag = 'scoped memory for tpu_custom_call.1']
    #allocation4 [shape = 's32[1]{0}', space=sflag, size = 0x4, scoped, tag = 'scoped memory for tpu_custom_call.1']
    #allocation5 [shape = 'u8[32768]{0}', space=vmem, size = 0x8000, scoped, tag = 'input window, operand 5, single buffered']
    #allocation6 [shape = 's32[1]{0}', space=sflag, size = 0x4, scoped, tag = 'scoped memory for tpu_custom_call.1']
    #allocation7 [shape = 'u8[4096]{0}', space=vmem, size = 0x1000, scoped, tag = 'output window, operand 0, single buffered']
    %14 = vsyncpa [#allocation3], 0
    %15 = vsyncpa [#allocation6], 0
    %16 = vsyncpa [#allocation4], 0
    // Predicated region
    $region2: #{tpu_custom_call.1} parent=1 // pred_check
      _
    $region3: #{tpu_custom_call.1} parent=1 // pred_check_branch
      %18 = sbr.rel (0) target = $region5
    $region4: #{tpu_custom_call.1} parent=1 // pred_region
      _
    $region5: #{tpu_custom_call.1} parent=1 // pred_fallthru
      _
    // Predicated region
    $region6: #{tpu_custom_call.1} parent=1 // pred_check
      _
    $region7: #{tpu_custom_call.1} parent=1 // pred_check_branch
      %20 = sbr.rel (0) target = $region9
    $region8: #{tpu_custom_call.1} parent=1 // pred_region
      _
    $region9: #{tpu_custom_call.1} parent=1 // pred_fallthru
      _
    // Predicated region
    $region10: #{tpu_custom_call.1} parent=1 // pred_check
      _
    $region11: #{tpu_custom_call.1} parent=1 // pred_check_branch
      %22 = sbr.rel (0) target = $region13
    $region12: #{tpu_custom_call.1} parent=1 // pred_region
      _
    $region13: #{tpu_custom_call.1} parent=1 // pred_fallthru
      _
    // Predicated region
    $region14: #{tpu_custom_call.1} parent=1 // pred_check
      _
    $region15: #{tpu_custom_call.1} parent=1 // pred_check_branch
      %24 = sbr.rel (0) target = $region17
    $region16: #{tpu_custom_call.1} parent=1 // pred_region
      %s26 = ssub.s32 2048, 2048
      %27 = vsyncadd [#allocation3], %s26
      %s28 = sshll.u32 [#allocation2], 4
      %s29 = int_to_ptr.vmem [resolvable:$true] %s28
      %34 = dma.hbm_to_vmem [thread:$0]  %s3, 2048, %s29, [#allocation3], 64, 64, 4
    $region17: #{tpu_custom_call.1} parent=1 // pred_fallthru
      _
    // Predicated region
    $region18: #{tpu_custom_call.1} parent=1 // pred_check
      _
    $region19: #{tpu_custom_call.1} parent=1 // pred_check_branch
      %36 = sbr.rel (0) target = $region21
    $region20: #{tpu_custom_call.1} parent=1 // pred_region
      _
    $region21: #{tpu_custom_call.1} parent=1 // pred_fallthru
      _
    // Predicated region
    $region22: #{tpu_custom_call.1} parent=1 // pred_check
      _
    $region23: #{tpu_custom_call.1} parent=1 // pred_check_branch
      %38 = sbr.rel (0) target = $region25
    $region24: #{tpu_custom_call.1} parent=1 // pred_region
      %s40 = ssub.s32 1024, 1024
      %41 = vsyncadd [#allocation6], %s40
      %s42 = sshll.u32 [#allocation5], 4
      %s43 = int_to_ptr.vmem [resolvable:$true] %s42
      %48 = dma.hbm_to_vmem [thread:$0]  %s5, 1024, %s43, [#allocation6], 64, 64, 4
    $region25: #{tpu_custom_call.1} parent=1 // pred_fallthru
      _
    // Predicated region
    $region26: #{tpu_custom_call.1} parent=1 // pred_check
      _
    $region27: #{tpu_custom_call.1} parent=1 // pred_check_branch
      %50 = sbr.rel (0) target = $region29
    $region28: #{tpu_custom_call.1} parent=1 // pred_region
      _
    $region29: #{tpu_custom_call.1} parent=1 // pred_fallthru
      _
    // Predicated region
    $region30: #{tpu_custom_call.1} parent=1 // pred_check
      _
    $region31: #{tpu_custom_call.1} parent=1 // pred_check_branch
      %52 = sbr.rel (0) target = $region33
    $region32: #{tpu_custom_call.1} parent=1 // pred_region
      _
    $region33: #{tpu_custom_call.1} parent=1 // pred_fallthru
      _
    // Predicated region
    $region34: #{tpu_custom_call.1} parent=1 // pred_check
      _
    $region35: #{tpu_custom_call.1} parent=1 // pred_check_branch
      %54 = sbr.rel (0) target = $region37
    $region36: #{tpu_custom_call.1} parent=1 // pred_region
      _
    $region37: #{tpu_custom_call.1} parent=1 // pred_fallthru
      _
    // Predicated region
    $region38: #{tpu_custom_call.1} parent=1 // pred_check
      _
    $region39: #{tpu_custom_call.1} parent=1 // pred_check_branch
      %56 = sbr.rel (0) target = $region41
    $region40: #{tpu_custom_call.1} parent=1 // pred_region
      %57 = dma.done [#allocation3], 2048
    $region41: #{tpu_custom_call.1} parent=1 // pred_fallthru
      _
    // Predicated region
    $region42: #{tpu_custom_call.1} parent=1 // pred_check
      _
    $region43: #{tpu_custom_call.1} parent=1 // pred_check_branch
      %59 = sbr.rel (0) target = $region45
    $region44: #{tpu_custom_call.1} parent=1 // pred_region
      %60 = dma.done [#allocation6], 1024
    $region45: #{tpu_custom_call.1} parent=1 // pred_fallthru
      _
    %v62 = vld [vmem:[%s0] sm:$0xff]
    %v63 = vpack.c.bf16 %v62, %v62
    %v64 = vld [vmem:[%s1] sm:$0xff]
    %v65 = vld [vmem:[%s1 + $0x8] sm:$0xff]
    %v66 = vld [vmem:[%s1 + $0x10] sm:$0xff]
    %v67 = vld [vmem:[%s1 + $0x18] sm:$0xff]
    %v68 = vld [vmem:[%s1 + $0x20] sm:$0xff]
    %v69 = vld [vmem:[%s1 + $0x28] sm:$0xff]
    %v70 = vld [vmem:[%s1 + $0x30] sm:$0xff]
    %v71 = vld [vmem:[%s1 + $0x38] sm:$0xff]
    %v72 = vld [vmem:[%s2] sm:$0x3]
    %v74 = vlaneseq
    %v75 = vshrl.u32 %v74, 7
    %v76 = vsub.s32 0, %v75
    %v77 = vrot.slane %v72, %v76
    %v78 = vlaneseq
    %v79 = vshrl.u32 %v78, 7
    %v80 = vsub.s32 1, %v79
    %v81 = vrot.slane %v72, %v80
    %v92 = vunpack.c.l.b16 %v64
    %v93 = vunpack.c.h.b16 %v64
    %v94 = vunpack.c.l.b16 %v65
    %v95 = vunpack.c.h.b16 %v65
    %v96 = vunpack.c.l.b16 %v66
    %v97 = vunpack.c.h.b16 %v66
    %v98 = vunpack.c.l.b16 %v67
    %v99 = vunpack.c.h.b16 %v67
    %v100 = vunpack.c.l.b16 %v68
    %v101 = vunpack.c.h.b16 %v68
    %v102 = vunpack.c.l.b16 %v69
    %v103 = vunpack.c.h.b16 %v69
    %v104 = vunpack.c.l.b16 %v70
    %v105 = vunpack.c.h.b16 %v70
    %v106 = vunpack.c.l.b16 %v71
    %v107 = vunpack.c.h.b16 %v71
    %v108 = vpack.c.b16 %v94, %v92
    %v109 = vpack.c.b16 %v95, %v93
    %v110 = vpack.c.b16 %v98, %v96
    %v111 = vpack.c.b16 %v99, %v97
    %v112 = vpack.c.b16 %v102, %v100
    %v113 = vpack.c.b16 %v103, %v101
    %v114 = vpack.c.b16 %v106, %v104
    %v115 = vpack.c.b16 %v107, %v105
    %vm124 = vcmask 523264
    %v126 = vsel %vm124, %v63, 0
    %128 = vmatprep.subr.bf16.mxu0 %v109
    %129 = vmatpush1.bf16.msra.mxu0 %v108
    %130 = vmatprep.subr.bf16.mxu0 %v111
    %131 = vmatpush1.bf16.msra.mxu0 %v110
    %132 = vmatprep.subr.bf16.mxu0 %v113
    %133 = vmatpush1.bf16.msra.mxu0 %v112
    %134 = vmatprep.subr.bf16.mxu0 %v115
    %135 = vmatpush1.bf16.msra.mxu0 %v114
    %136 = vmatprep.subr.bf16.mxu0 0
    %137 = vmatpush1.bf16.msra.mxu0 0
    %138 = vmatprep.subr.bf16.mxu0 0
    %139 = vmatpush1.bf16.msra.mxu0 0
    %140 = vmatprep.subr.bf16.mxu0 0
    %141 = vmatpush1.bf16.msra.mxu0 0
    %142 = vmatprep.subr.bf16.mxu0 0
    %143 = vmatpush1.bf16.msra.mxu0 0
    %144 = vmatprep.subr.bf16.mxu0 0
    %145 = vmatpush1.bf16.msra.mxu0 0
    %146 = vmatprep.subr.bf16.mxu0 0
    %147 = vmatpush1.bf16.msra.mxu0 0
    %148 = vmatprep.subr.bf16.mxu0 0
    %149 = vmatpush1.bf16.msra.mxu0 0
    %150 = vmatprep.subr.bf16.mxu0 0
    %151 = vmatpush1.bf16.msra.mxu0 0
    %152 = vmatprep.subr.bf16.mxu0 0
    %153 = vmatpush1.bf16.msra.mxu0 0
    %154 = vmatprep.subr.bf16.mxu0 0
    %155 = vmatpush1.bf16.msra.mxu0 0
    %156 = vmatprep.subr.bf16.mxu0 0
    %157 = vmatpush1.bf16.msra.mxu0 0
    %158 = vmatprep.subr.bf16.mxu0 0
    %159 = vmatpush1.bf16.msra.mxu0 0
    %160 = vmatprep.mubr.bf16.mxu0 0
    %161 = vmatmul.mubr.bf16.gmra.mrb[0].mxu0 %v126
    %v162 = vpop.f32.mrb[0].mxu0
    %v163 = vadd.f32 %v77, %v162
    %v164 = vpop.f32.mrb[0].mxu0
    %v165 = vadd.f32 %v81, %v164
    %v166 = vpop.f32.mrb[0].mxu0
    %v167 = vpop.f32.mrb[0].mxu0
    %168 = vdwg.mxu0
    %v169 = vmax.f32 %v163, 0.0
    %v170 = vmax.f32 %v165, 0.0
    %v171 = vpack.c.bf16 %v169, %v169
    %v172 = vpack.c.bf16 %v170, %v170
    %v173 = vld [vmem:[#allocation2] sm:$0xf]
    %v174 = vld [vmem:[#allocation2 + $0x4] sm:$0xf]
    %v175 = vld [vmem:[#allocation2 + $0x8] sm:$0xf]
    %v176 = vld [vmem:[#allocation2 + $0xc] sm:$0xf]
    %v177 = vld [vmem:[#allocation2 + $0x10] sm:$0xf]
    %v178 = vld [vmem:[#allocation2 + $0x14] sm:$0xf]
    %v179 = vld [vmem:[#allocation2 + $0x18] sm:$0xf]
    %v180 = vld [vmem:[#allocation2 + $0x1c] sm:$0xf]
    %v181 = vld [vmem:[#allocation2 + $0x20] sm:$0xf]
    %v182 = vld [vmem:[#allocation2 + $0x24] sm:$0xf]
    %v183 = vld [vmem:[#allocation2 + $0x28] sm:$0xf]
    %v184 = vld [vmem:[#allocation2 + $0x2c] sm:$0xf]
    %v185 = vld [vmem:[#allocation2 + $0x30] sm:$0xf]
    %v186 = vld [vmem:[#allocation2 + $0x34] sm:$0xf]
    %v187 = vld [vmem:[#allocation2 + $0x38] sm:$0xf]
    %v188 = vld [vmem:[#allocation2 + $0x3c] sm:$0xf]
    %v189 = vld [vmem:[#allocation2 + $0x40] sm:$0xf]
    %v190 = vld [vmem:[#allocation2 + $0x44] sm:$0xf]
    %v191 = vld [vmem:[#allocation2 + $0x48] sm:$0xf]
    %v192 = vld [vmem:[#allocation2 + $0x4c] sm:$0xf]
    %v193 = vld [vmem:[#allocation2 + $0x50] sm:$0xf]
    %v194 = vld [vmem:[#allocation2 + $0x54] sm:$0xf]
    %v195 = vld [vmem:[#allocation2 + $0x58] sm:$0xf]
    %v196 = vld [vmem:[#allocation2 + $0x5c] sm:$0xf]
    %v197 = vld [vmem:[#allocation2 + $0x60] sm:$0xf]
    %v198 = vld [vmem:[#allocation2 + $0x64] sm:$0xf]
    %v199 = vld [vmem:[#allocation2 + $0x68] sm:$0xf]
    %v200 = vld [vmem:[#allocation2 + $0x6c] sm:$0xf]
    %v201 = vld [vmem:[#allocation2 + $0x70] sm:$0xf]
    %v202 = vld [vmem:[#allocation2 + $0x74] sm:$0xf]
    %v203 = vld [vmem:[#allocation2 + $0x78] sm:$0xf]
    %v204 = vld [vmem:[#allocation2 + $0x7c] sm:$0xf]
    %v205 = vld [vmem:[%s4] sm:$0x1]
    %v207 = vlaneseq
    %v208 = vshrl.u32 %v207, 7
    %v209 = vsub.s32 0, %v208
    %v210 = vrot.slane %v205, %v209
    %v244 = vunpack.c.l.b16 %v173
    %v245 = vunpack.c.l.b16 %v174
    %v246 = vunpack.c.l.b16 %v175
    %v247 = vunpack.c.l.b16 %v176
    %v248 = vunpack.c.l.b16 %v177
    %v249 = vunpack.c.l.b16 %v178
    %v250 = vunpack.c.l.b16 %v179
    %v251 = vunpack.c.l.b16 %v180
    %v252 = vunpack.c.l.b16 %v181
    %v253 = vunpack.c.l.b16 %v182
    %v254 = vunpack.c.l.b16 %v183
    %v255 = vunpack.c.l.b16 %v184
    %v256 = vunpack.c.l.b16 %v185
    %v257 = vunpack.c.l.b16 %v186
    %v258 = vunpack.c.l.b16 %v187
    %v259 = vunpack.c.l.b16 %v188
    %v260 = vunpack.c.l.b16 %v189
    %v261 = vunpack.c.l.b16 %v190
    %v262 = vunpack.c.l.b16 %v191
    %v263 = vunpack.c.l.b16 %v192
    %v264 = vunpack.c.l.b16 %v193
    %v265 = vunpack.c.l.b16 %v194
    %v266 = vunpack.c.l.b16 %v195
    %v267 = vunpack.c.l.b16 %v196
    %v268 = vunpack.c.l.b16 %v197
    %v269 = vunpack.c.l.b16 %v198
    %v270 = vunpack.c.l.b16 %v199
    %v271 = vunpack.c.l.b16 %v200
    %v272 = vunpack.c.l.b16 %v201
    %v273 = vunpack.c.l.b16 %v202
    %v274 = vunpack.c.l.b16 %v203
    %v275 = vunpack.c.l.b16 %v204
    %v276 = vpack.c.b16 %v245, %v244
    %v277 = vpack.c.b16 %v247, %v246
    %v278 = vpack.c.b16 %v249, %v248
    %v279 = vpack.c.b16 %v251, %v250
    %v280 = vpack.c.b16 %v253, %v252
    %v281 = vpack.c.b16 %v255, %v254
    %v282 = vpack.c.b16 %v257, %v256
    %v283 = vpack.c.b16 %v259, %v258
    %v284 = vpack.c.b16 %v261, %v260
    %v285 = vpack.c.b16 %v263, %v262
    %v286 = vpack.c.b16 %v265, %v264
    %v287 = vpack.c.b16 %v267, %v266
    %v288 = vpack.c.b16 %v269, %v268
    %v289 = vpack.c.b16 %v271, %v270
    %v290 = vpack.c.b16 %v273, %v272
    %v291 = vpack.c.b16 %v275, %v274
    %308 = vmatprep.subr.bf16.mxu0 0
    %309 = vmatpush1.bf16.msra.mxu0 %v276
    %310 = vmatprep.subr.bf16.mxu0 0
    %311 = vmatpush1.bf16.msra.mxu0 %v277
    %312 = vmatprep.subr.bf16.mxu0 0
    %313 = vmatpush1.bf16.msra.mxu0 %v278
    %314 = vmatprep.subr.bf16.mxu0 0
    %315 = vmatpush1.bf16.msra.mxu0 %v279
    %316 = vmatprep.subr.bf16.mxu0 0
    %317 = vmatpush1.bf16.msra.mxu0 %v280
    %318 = vmatprep.subr.bf16.mxu0 0
    %319 = vmatpush1.bf16.msra.mxu0 %v281
    %320 = vmatprep.subr.bf16.mxu0 0
    %321 = vmatpush1.bf16.msra.mxu0 %v282
    %322 = vmatprep.subr.bf16.mxu0 0
    %323 = vmatpush1.bf16.msra.mxu0 %v283
    %324 = vmatprep.subr.bf16.mxu0 0
    %325 = vmatpush1.bf16.msra.mxu0 %v284
    %326 = vmatprep.subr.bf16.mxu0 0
    %327 = vmatpush1.bf16.msra.mxu0 %v285
    %328 = vmatprep.subr.bf16.mxu0 0
    %329 = vmatpush1.bf16.msra.mxu0 %v286
    %330 = vmatprep.subr.bf16.mxu0 0
    %331 = vmatpush1.bf16.msra.mxu0 %v287
    %332 = vmatprep.subr.bf16.mxu0 0
    %333 = vmatpush1.bf16.msra.mxu0 %v288
    %334 = vmatprep.subr.bf16.mxu0 0
    %335 = vmatpush1.bf16.msra.mxu0 %v289
    %336 = vmatprep.subr.bf16.mxu0 0
    %337 = vmatpush1.bf16.msra.mxu0 %v290
    %338 = vmatprep.subr.bf16.mxu0 0
    %339 = vmatpush1.bf16.msra.mxu0 %v291
    %340 = vmatprep.mubr.bf16.mxu0 %v172
    %341 = vmatmul.mubr.bf16.gmra.mrb[0].mxu0 %v171
    %v342 = vpop.f32.mrb[0].mxu0
    %v343 = vadd.f32 %v210, %v342
    %v344 = vpop.f32.mrb[0].mxu0
    %v345 = vpop.f32.mrb[0].mxu0
    %v346 = vpop.f32.mrb[0].mxu0
    %347 = vdwg.mxu0
    %v348 = vmax.f32 %v343, 0.0
    %v349 = vpack.c.bf16 %v348, %v348
    %v350 = vld [vmem:[#allocation5] sm:$0xf]
    %v351 = vld [vmem:[#allocation5 + $0x4] sm:$0xf]
    %v352 = vld [vmem:[#allocation5 + $0x8] sm:$0xf]
    %v353 = vld [vmem:[#allocation5 + $0xc] sm:$0xf]
    %v354 = vld [vmem:[#allocation5 + $0x10] sm:$0xf]
    %v355 = vld [vmem:[#allocation5 + $0x14] sm:$0xf]
    %v356 = vld [vmem:[#allocation5 + $0x18] sm:$0xf]
    %v357 = vld [vmem:[#allocation5 + $0x1c] sm:$0xf]
    %v358 = vld [vmem:[#allocation5 + $0x20] sm:$0xf]
    %v359 = vld [vmem:[#allocation5 + $0x24] sm:$0xf]
    %v360 = vld [vmem:[#allocation5 + $0x28] sm:$0xf]
    %v361 = vld [vmem:[#allocation5 + $0x2c] sm:$0xf]
    %v362 = vld [vmem:[#allocation5 + $0x30] sm:$0xf]
    %v363 = vld [vmem:[#allocation5 + $0x34] sm:$0xf]
    %v364 = vld [vmem:[#allocation5 + $0x38] sm:$0xf]
    %v365 = vld [vmem:[#allocation5 + $0x3c] sm:$0xf]
    %v366 = vld [vmem:[%s6] sm:$0x1]
    %v368 = vlaneseq
    %v369 = vshrl.u32 %v368, 7
    %v370 = vsub.s32 0, %v369
    %v371 = vrot.slane %v366, %v370
    %v389 = vunpack.c.l.b16 %v350
    %v390 = vunpack.c.l.b16 %v351
    %v391 = vunpack.c.l.b16 %v352
    %v392 = vunpack.c.l.b16 %v353
    %v393 = vunpack.c.l.b16 %v354
    %v394 = vunpack.c.l.b16 %v355
    %v395 = vunpack.c.l.b16 %v356
    %v396 = vunpack.c.l.b16 %v357
    %v397 = vunpack.c.l.b16 %v358
    %v398 = vunpack.c.l.b16 %v359
    %v399 = vunpack.c.l.b16 %v360
    %v400 = vunpack.c.l.b16 %v361
    %v401 = vunpack.c.l.b16 %v362
    %v402 = vunpack.c.l.b16 %v363
    %v403 = vunpack.c.l.b16 %v364
    %v404 = vunpack.c.l.b16 %v365
    %v405 = vpack.c.b16 %v390, %v389
    %v406 = vpack.c.b16 %v392, %v391
    %v407 = vpack.c.b16 %v394, %v393
    %v408 = vpack.c.b16 %v396, %v395
    %v409 = vpack.c.b16 %v398, %v397
    %v410 = vpack.c.b16 %v400, %v399
    %v411 = vpack.c.b16 %v402, %v401
    %v412 = vpack.c.b16 %v404, %v403
    %421 = vmatprep.subr.bf16.mxu0 0
    %422 = vmatpush1.bf16.msra.mxu0 %v405
    %423 = vmatprep.subr.bf16.mxu0 0
    %424 = vmatpush1.bf16.msra.mxu0 %v406
    %425 = vmatprep.subr.bf16.mxu0 0
    %426 = vmatpush1.bf16.msra.mxu0 %v407
    %427 = vmatprep.subr.bf16.mxu0 0
    %428 = vmatpush1.bf16.msra.mxu0 %v408
    %429 = vmatprep.subr.bf16.mxu0 0
    %430 = vmatpush1.bf16.msra.mxu0 %v409
    %431 = vmatprep.subr.bf16.mxu0 0
    %432 = vmatpush1.bf16.msra.mxu0 %v410
    %433 = vmatprep.subr.bf16.mxu0 0
    %434 = vmatpush1.bf16.msra.mxu0 %v411
    %435 = vmatprep.subr.bf16.mxu0 0
    %436 = vmatpush1.bf16.msra.mxu0 %v412
    %437 = vmatprep.subr.bf16.mxu0 0
    %438 = vmatpush1.bf16.msra.mxu0 0
    %439 = vmatprep.subr.bf16.mxu0 0
    %440 = vmatpush1.bf16.msra.mxu0 0
    %441 = vmatprep.subr.bf16.mxu0 0
    %442 = vmatpush1.bf16.msra.mxu0 0
    %443 = vmatprep.subr.bf16.mxu0 0
    %444 = vmatpush1.bf16.msra.mxu0 0
    %445 = vmatprep.subr.bf16.mxu0 0
    %446 = vmatpush1.bf16.msra.mxu0 0
    %447 = vmatprep.subr.bf16.mxu0 0
    %448 = vmatpush1.bf16.msra.mxu0 0
    %449 = vmatprep.subr.bf16.mxu0 0
    %450 = vmatpush1.bf16.msra.mxu0 0
    %451 = vmatprep.subr.bf16.mxu0 0
    %452 = vmatpush1.bf16.msra.mxu0 0
    %453 = vmatprep.mubr.bf16.mxu0 0
    %454 = vmatmul.mubr.bf16.gmra.mrb[0].mxu0 %v349
    %v455 = vpop.f32.mrb[0].mxu0
    %v456 = vadd.f32 %v371, %v455
    %v457 = vpop.f32.mrb[0].mxu0
    %v458 = vpop.f32.mrb[0].mxu0
    %v459 = vpop.f32.mrb[0].mxu0
    %460 = vdwg.mxu0
    %v461 = vmax.f32 %v456, 0.0
    %v462 = vpack.c.bf16 %v461, %v461
    %v463 = vld [vmem:[%s7] sm:$0xf]
    %v464 = vld [vmem:[%s7 + $0x4] sm:$0xf]
    %v465 = vld [vmem:[%s7 + $0x8] sm:$0xf]
    %v466 = vld [vmem:[%s7 + $0xc] sm:$0xf]
    %v467 = vld [vmem:[%s7 + $0x10] sm:$0xf]
    %v468 = vld [vmem:[%s7 + $0x14] sm:$0xf]
    %v469 = vld [vmem:[%s7 + $0x18] sm:$0xf]
    %v470 = vld [vmem:[%s7 + $0x1c] sm:$0xf]
    %v471 = vld [vmem:[%s7 + $0x20] sm:$0xf]
    %v472 = vld [vmem:[%s7 + $0x24] sm:$0xf]
    %v473 = vld [vmem:[%s7 + $0x28] sm:$0xf]
    %v474 = vld [vmem:[%s7 + $0x2c] sm:$0xf]
    %v475 = vld [vmem:[%s7 + $0x30] sm:$0xf]
    %v476 = vld [vmem:[%s7 + $0x34] sm:$0xf]
    %v477 = vld [vmem:[%s7 + $0x38] sm:$0xf]
    %v478 = vld [vmem:[%s7 + $0x3c] sm:$0xf]
    %v479 = vld [vmem:[%s8] sm:$0x1]
    %v481 = vlaneseq
    %v482 = vshrl.u32 %v481, 7
    %v483 = vsub.s32 0, %v482
    %v484 = vrot.slane %v479, %v483
    %v502 = vunpack.c.l.b16 %v463
    %v503 = vunpack.c.l.b16 %v464
    %v504 = vunpack.c.l.b16 %v465
    %v505 = vunpack.c.l.b16 %v466
    %v506 = vunpack.c.l.b16 %v467
    %v507 = vunpack.c.l.b16 %v468
    %v508 = vunpack.c.l.b16 %v469
    %v509 = vunpack.c.l.b16 %v470
    %v510 = vunpack.c.l.b16 %v471
    %v511 = vunpack.c.l.b16 %v472
    %v512 = vunpack.c.l.b16 %v473
    %v513 = vunpack.c.l.b16 %v474
    %v514 = vunpack.c.l.b16 %v475
    %v515 = vunpack.c.l.b16 %v476
    %v516 = vunpack.c.l.b16 %v477
    %v517 = vunpack.c.l.b16 %v478
    %v518 = vpack.c.b16 %v503, %v502
    %v519 = vpack.c.b16 %v505, %v504
    %v520 = vpack.c.b16 %v507, %v506
    %v521 = vpack.c.b16 %v509, %v508
    %v522 = vpack.c.b16 %v511, %v510
    %v523 = vpack.c.b16 %v513, %v512
    %v524 = vpack.c.b16 %v515, %v514
    %v525 = vpack.c.b16 %v517, %v516
    %534 = vmatprep.subr.bf16.mxu0 0
    %535 = vmatpush1.bf16.msra.mxu0 %v518
    %536 = vmatprep.subr.bf16.mxu0 0
    %537 = vmatpush1.bf16.msra.mxu0 %v519
    %538 = vmatprep.subr.bf16.mxu0 0
    %539 = vmatpush1.bf16.msra.mxu0 %v520
    %540 = vmatprep.subr.bf16.mxu0 0
    %541 = vmatpush1.bf16.msra.mxu0 %v521
    %542 = vmatprep.subr.bf16.mxu0 0
    %543 = vmatpush1.bf16.msra.mxu0 %v522
    %544 = vmatprep.subr.bf16.mxu0 0
    %545 = vmatpush1.bf16.msra.mxu0 %v523
    %546 = vmatprep.subr.bf16.mxu0 0
    %547 = vmatpush1.bf16.msra.mxu0 %v524
    %548 = vmatprep.subr.bf16.mxu0 0
    %549 = vmatpush1.bf16.msra.mxu0 %v525
    %550 = vmatprep.subr.bf16.mxu0 0
    %551 = vmatpush1.bf16.msra.mxu0 0
    %552 = vmatprep.subr.bf16.mxu0 0
    %553 = vmatpush1.bf16.msra.mxu0 0
    %554 = vmatprep.subr.bf16.mxu0 0
    %555 = vmatpush1.bf16.msra.mxu0 0
    %556 = vmatprep.subr.bf16.mxu0 0
    %557 = vmatpush1.bf16.msra.mxu0 0
    %558 = vmatprep.subr.bf16.mxu0 0
    %559 = vmatpush1.bf16.msra.mxu0 0
    %560 = vmatprep.subr.bf16.mxu0 0
    %561 = vmatpush1.bf16.msra.mxu0 0
    %562 = vmatprep.subr.bf16.mxu0 0
    %563 = vmatpush1.bf16.msra.mxu0 0
    %564 = vmatprep.subr.bf16.mxu0 0
    %565 = vmatpush1.bf16.msra.mxu0 0
    %566 = vmatprep.mubr.bf16.mxu0 0
    %567 = vmatmul.mubr.bf16.gmra.mrb[0].mxu0 %v462
    %v568 = vpop.f32.mrb[0].mxu0
    %v569 = vadd.f32 %v484, %v568
    %v570 = vpop.f32.mrb[0].mxu0
    %v571 = vpop.f32.mrb[0].mxu0
    %v572 = vpop.f32.mrb[0].mxu0
    %573 = vdwg.mxu0
    %vm574 = vcmask 261120
    %575 = vst.msk [vmem:[#allocation7] sm:$0xff] %vm574, %v569
    // Predicated region
    $region46: #{tpu_custom_call.1} parent=1 // pred_check
      _
    $region47: #{tpu_custom_call.1} parent=1 // pred_check_branch
      %577 = sbr.rel (0) target = $region49
    $region48: #{tpu_custom_call.1} parent=1 // pred_region
      %s579 = ssub.s32 128, 128
      %580 = vsyncadd [#allocation4], %s579
      %s582 = sshll.u32 [#allocation7], 4
      %s583 = int_to_ptr.vmem [resolvable:$true] %s582
      %585 = dma.vmem_to_hbm [thread:$0]  %s583, 128, %s9, [#allocation4]
    $region49: #{tpu_custom_call.1} parent=1 // pred_fallthru
      _
    // Predicated region
    $region50: #{tpu_custom_call.1} parent=1 // pred_check
      _
    $region51: #{tpu_custom_call.1} parent=1 // pred_check_branch
      %587 = sbr.rel (0) target = $region53
    $region52: #{tpu_custom_call.1} parent=1 // pred_region
      %588 = dma.done [#allocation4], 128
    $region53: #{tpu_custom_call.1} parent=1 // pred_fallthru
      _
    %589 = vsyncpa [#allocation3], 1
    %590 = vsyncpa [#allocation6], 1
    %591 = vsyncpa [#allocation4], 1

// kernel: tpu_custom_call.1
$region0: #{tpu_custom_call.1}
  #allocation0 [shape = 'u32[]', space=smem, size = 0x4, offset = 0x4, fixed_abs, tag = 'smem constant byte address 0x4 - core index']
  #allocation1 [shape = 'u32[144,128]{1,0:T(1,128)}', space=vmem, size = 0x12000, scoped, tag = 'internal scratch']
  %s0 = inlined_call_operand.vmem [shape: f32[8,64], index: 0, kind: input, shape index: {}]
  %s1 = inlined_call_operand.vmem [shape: bf16[64,256], index: 1, kind: input, shape index: {}]
  %s2 = inlined_call_operand.vmem [shape: f32[1,256], index: 2, kind: input, shape index: {}]
  %s3 = inlined_call_operand.hbm [shape: bf16[256,128], index: 3, kind: input, shape index: {}]
  %s4 = inlined_call_operand.vmem [shape: f32[1,128], index: 4, kind: input, shape index: {}]
  %s5 = inlined_call_operand.hbm [shape: bf16[128,128], index: 5, kind: input, shape index: {}]
  %s6 = inlined_call_operand.vmem [shape: f32[1,128], index: 6, kind: input, shape index: {}]
  %s7 = inlined_call_operand.vmem [shape: bf16[128,32], index: 7, kind: input, shape index: {}]
  %s8 = inlined_call_operand.vmem [shape: f32[1,32], index: 8, kind: input, shape index: {}]
  %s9 = inlined_call_operand.hbm [shape: f32[8,32], index: 9, kind: output, shape index: {}]
  %s10 = sld [smem:[#allocation0]]
  $region54: #{tpu_custom_call.1} parent=0
    _
  %s12 = ssub.s32 1, %s10
  %s13 = scalar_select 0, %s12, %s10
  $region1: #{tpu_custom_call.1} parent=0
    #allocation2 [shape = 'u8[65536]{0}', space=vmem, size = 0x10000, scoped, tag = 'input window, operand 3, single buffered']
    #allocation3 [shape = 's32[1]{0}', space=sflag, size = 0x4, scoped, tag = 'scoped memory for tpu_custom_call.1']
    #allocation4 [shape = 's32[1]{0}', space=sflag, size = 0x4, scoped, tag = 'scoped memory for tpu_custom_call.1']
    #allocation5 [shape = 'u8[32768]{0}', space=vmem, size = 0x8000, scoped, tag = 'input window, operand 5, single buffered']
    #allocation6 [shape = 's32[1]{0}', space=sflag, size = 0x4, scoped, tag = 'scoped memory for tpu_custom_call.1']
    #allocation7 [shape = 'u8[4096]{0}', space=vmem, size = 0x1000, scoped, tag = 'output window, operand 0, single buffered']
    %14 = vsyncpa [#allocation3], 0
    %15 = vsyncpa [#allocation6], 0
    %16 = vsyncpa [#allocation4], 0
    // Predicated region
    $region2: #{tpu_custom_call.1} parent=1 // pred_check
      _
    $region3: #{tpu_custom_call.1} parent=1 // pred_check_branch
      %18 = sbr.rel (0) target = $region5
    $region4: #{tpu_custom_call.1} parent=1 // pred_region
      _
    $region5: #{tpu_custom_call.1} parent=1 // pred_fallthru
      _
    // Predicated region
    $region6: #{tpu_custom_call.1} parent=1 // pred_check
      _
    $region7: #{tpu_custom_call.1} parent=1 // pred_check_branch
      %20 = sbr.rel (0) target = $region9
    $region8: #{tpu_custom_call.1} parent=1 // pred_region
      _
    $region9: #{tpu_custom_call.1} parent=1 // pred_fallthru
      _
    // Predicated region
    $region10: #{tpu_custom_call.1} parent=1 // pred_check
      _
    $region11: #{tpu_custom_call.1} parent=1 // pred_check_branch
      %22 = sbr.rel (0) target = $region13
    $region12: #{tpu_custom_call.1} parent=1 // pred_region
      _
    $region13: #{tpu_custom_call.1} parent=1 // pred_fallthru
      _
    // Predicated region
    $region14: #{tpu_custom_call.1} parent=1 // pred_check
      _
    $region15: #{tpu_custom_call.1} parent=1 // pred_check_branch
      %24 = sbr.rel (0) target = $region17
    $region16: #{tpu_custom_call.1} parent=1 // pred_region
      %s26 = ssub.s32 2048, 2048
      %27 = vsyncadd [#allocation3], %s26
      %s28 = sshll.u32 [#allocation2], 4
      %s29 = int_to_ptr.vmem [resolvable:$true] %s28
      %34 = dma.hbm_to_vmem [thread:$0]  %s3, 2048, %s29, [#allocation3], 64, 64, 4
    $region17: #{tpu_custom_call.1} parent=1 // pred_fallthru
      _
    // Predicated region
    $region18: #{tpu_custom_call.1} parent=1 // pred_check
      _
    $region19: #{tpu_custom_call.1} parent=1 // pred_check_branch
      %36 = sbr.rel (0) target = $region21
    $region20: #{tpu_custom_call.1} parent=1 // pred_region
      _
    $region21: #{tpu_custom_call.1} parent=1 // pred_fallthru
      _
    // Predicated region
    $region22: #{tpu_custom_call.1} parent=1 // pred_check
      _
    $region23: #{tpu_custom_call.1} parent=1 // pred_check_branch
      %38 = sbr.rel (0) target = $region25
    $region24: #{tpu_custom_call.1} parent=1 // pred_region
      %s40 = ssub.s32 1024, 1024
      %41 = vsyncadd [#allocation6], %s40
      %s42 = sshll.u32 [#allocation5], 4
      %s43 = int_to_ptr.vmem [resolvable:$true] %s42
      %48 = dma.hbm_to_vmem [thread:$0]  %s5, 1024, %s43, [#allocation6], 64, 64, 4
    $region25: #{tpu_custom_call.1} parent=1 // pred_fallthru
      _
    // Predicated region
    $region26: #{tpu_custom_call.1} parent=1 // pred_check
      _
    $region27: #{tpu_custom_call.1} parent=1 // pred_check_branch
      %50 = sbr.rel (0) target = $region29
    $region28: #{tpu_custom_call.1} parent=1 // pred_region
      _
    $region29: #{tpu_custom_call.1} parent=1 // pred_fallthru
      _
    // Predicated region
    $region30: #{tpu_custom_call.1} parent=1 // pred_check
      _
    $region31: #{tpu_custom_call.1} parent=1 // pred_check_branch
      %52 = sbr.rel (0) target = $region33
    $region32: #{tpu_custom_call.1} parent=1 // pred_region
      _
    $region33: #{tpu_custom_call.1} parent=1 // pred_fallthru
      _
    // Predicated region
    $region34: #{tpu_custom_call.1} parent=1 // pred_check
      _
    $region35: #{tpu_custom_call.1} parent=1 // pred_check_branch
      %54 = sbr.rel (0) target = $region37
    $region36: #{tpu_custom_call.1} parent=1 // pred_region
      _
    $region37: #{tpu_custom_call.1} parent=1 // pred_fallthru
      _
    // Predicated region
    $region38: #{tpu_custom_call.1} parent=1 // pred_check
      _
    $region39: #{tpu_custom_call.1} parent=1 // pred_check_branch
      %56 = sbr.rel (0) target = $region41
    $region40: #{tpu_custom_call.1} parent=1 // pred_region
      %57 = dma.done [#allocation3], 2048
    $region41: #{tpu_custom_call.1} parent=1 // pred_fallthru
      _
    // Predicated region
    $region42: #{tpu_custom_call.1} parent=1 // pred_check
      _
    $region43: #{tpu_custom_call.1} parent=1 // pred_check_branch
      %59 = sbr.rel (0) target = $region45
    $region44: #{tpu_custom_call.1} parent=1 // pred_region
      %60 = dma.done [#allocation6], 1024
    $region45: #{tpu_custom_call.1} parent=1 // pred_fallthru
      _
    %v62 = vld [vmem:[%s0] sm:$0xff]
    %v63 = vpack.c.bf16 %v62, %v62
    %v64 = vld [vmem:[%s1] sm:$0xff]
    %v65 = vld [vmem:[%s1 + $0x8] sm:$0xff]
    %v66 = vld [vmem:[%s1 + $0x10] sm:$0xff]
    %v67 = vld [vmem:[%s1 + $0x18] sm:$0xff]
    %v68 = vld [vmem:[%s1 + $0x20] sm:$0xff]
    %v69 = vld [vmem:[%s1 + $0x28] sm:$0xff]
    %v70 = vld [vmem:[%s1 + $0x30] sm:$0xff]
    %v71 = vld [vmem:[%s1 + $0x38] sm:$0xff]
    %v72 = vld [vmem:[%s2] sm:$0x3]
    %v74 = vlaneseq
    %v75 = vshrl.u32 %v74, 7
    %v76 = vsub.s32 0, %v75
    %v77 = vrot.slane %v72, %v76
    %v78 = vlaneseq
    %v79 = vshrl.u32 %v78, 7
    %v80 = vsub.s32 1, %v79
    %v81 = vrot.slane %v72, %v80
    %v92 = vunpack.c.l.b16 %v64
    %v93 = vunpack.c.h.b16 %v64
    %v94 = vunpack.c.l.b16 %v65
    %v95 = vunpack.c.h.b16 %v65
    %v96 = vunpack.c.l.b16 %v66
    %v97 = vunpack.c.h.b16 %v66
    %v98 = vunpack.c.l.b16 %v67
    %v99 = vunpack.c.h.b16 %v67
    %v100 = vunpack.c.l.b16 %v68
    %v101 = vunpack.c.h.b16 %v68
    %v102 = vunpack.c.l.b16 %v69
    %v103 = vunpack.c.h.b16 %v69
    %v104 = vunpack.c.l.b16 %v70
    %v105 = vunpack.c.h.b16 %v70
    %v106 = vunpack.c.l.b16 %v71
    %v107 = vunpack.c.h.b16 %v71
    %v108 = vpack.c.b16 %v94, %v92
    %v109 = vpack.c.b16 %v95, %v93
    %v110 = vpack.c.b16 %v98, %v96
    %v111 = vpack.c.b16 %v99, %v97
    %v112 = vpack.c.b16 %v102, %v100
    %v113 = vpack.c.b16 %v103, %v101
    %v114 = vpack.c.b16 %v106, %v104
    %v115 = vpack.c.b16 %v107, %v105
    %vm124 = vcmask 523264
    %v126 = vsel %vm124, %v63, 0
    %128 = vmatprep.subr.bf16.mxu0 %v109
    %129 = vmatpush1.bf16.msra.mxu0 %v108
    %130 = vmatprep.subr.bf16.mxu0 %v111
    %131 = vmatpush1.bf16.msra.mxu0 %v110
    %132 = vmatprep.subr.bf16.mxu0 %v113
    %133 = vmatpush1.bf16.msra.mxu0 %v112
    %134 = vmatprep.subr.bf16.mxu0 %v115
    %135 = vmatpush1.bf16.msra.mxu0 %v114
    %136 = vmatprep.subr.bf16.mxu0 0
    %137 = vmatpush1.bf16.msra.mxu0 0
    %138 = vmatprep.subr.bf16.mxu0 0
    %139 = vmatpush1.bf16.msra.mxu0 0
    %140 = vmatprep.subr.bf16.mxu0 0
    %141 = vmatpush1.bf16.msra.mxu0 0
    %142 = vmatprep.subr.bf16.mxu0 0
    %143 = vmatpush1.bf16.msra.mxu0 0
    %144 = vmatprep.subr.bf16.mxu0 0
    %145 = vmatpush1.bf16.msra.mxu0 0
    %146 = vmatprep.subr.bf16.mxu0 0
    %147 = vmatpush1.bf16.msra.mxu0 0
    %148 = vmatprep.subr.bf16.mxu0 0
    %149 = vmatpush1.bf16.msra.mxu0 0
    %150 = vmatprep.subr.bf16.mxu0 0
    %151 = vmatpush1.bf16.msra.mxu0 0
    %152 = vmatprep.subr.bf16.mxu0 0
    %153 = vmatpush1.bf16.msra.mxu0 0
    %154 = vmatprep.subr.bf16.mxu0 0
    %155 = vmatpush1.bf16.msra.mxu0 0
    %156 = vmatprep.subr.bf16.mxu0 0
    %157 = vmatpush1.bf16.msra.mxu0 0
    %158 = vmatprep.subr.bf16.mxu0 0
    %159 = vmatpush1.bf16.msra.mxu0 0
    %160 = vmatprep.mubr.bf16.mxu0 0
    %161 = vmatmul.mubr.bf16.gmra.mrb[0].mxu0 %v126
    %v162 = vpop.f32.mrb[0].mxu0
    %v163 = vadd.f32 %v77, %v162
    %v164 = vpop.f32.mrb[0].mxu0
    %v165 = vadd.f32 %v81, %v164
    %v166 = vpop.f32.mrb[0].mxu0
    %v167 = vpop.f32.mrb[0].mxu0
    %168 = vdwg.mxu0
    %v169 = vmax.f32 %v163, 0.0
    %v170 = vmax.f32 %v165, 0.0
    %v171 = vpack.c.bf16 %v169, %v169
    %v172 = vpack.c.bf16 %v170, %v170
    %v173 = vld [vmem:[#allocation2] sm:$0xf]
    %v174 = vld [vmem:[#allocation2 + $0x4] sm:$0xf]
    %v175 = vld [vmem:[#allocation2 + $0x8] sm:$0xf]
    %v176 = vld [vmem:[#allocation2 + $0xc] sm:$0xf]
    %v177 = vld [vmem:[#allocation2 + $0x10] sm:$0xf]
    %v178 = vld [vmem:[#allocation2 + $0x14] sm:$0xf]
    %v179 = vld [vmem:[#allocation2 + $0x18] sm:$0xf]
    %v180 = vld [vmem:[#allocation2 + $0x1c] sm:$0xf]
    %v181 = vld [vmem:[#allocation2 + $0x20] sm:$0xf]
    %v182 = vld [vmem:[#allocation2 + $0x24] sm:$0xf]
    %v183 = vld [vmem:[#allocation2 + $0x28] sm:$0xf]
    %v184 = vld [vmem:[#allocation2 + $0x2c] sm:$0xf]
    %v185 = vld [vmem:[#allocation2 + $0x30] sm:$0xf]
    %v186 = vld [vmem:[#allocation2 + $0x34] sm:$0xf]
    %v187 = vld [vmem:[#allocation2 + $0x38] sm:$0xf]
    %v188 = vld [vmem:[#allocation2 + $0x3c] sm:$0xf]
    %v189 = vld [vmem:[#allocation2 + $0x40] sm:$0xf]
    %v190 = vld [vmem:[#allocation2 + $0x44] sm:$0xf]
    %v191 = vld [vmem:[#allocation2 + $0x48] sm:$0xf]
    %v192 = vld [vmem:[#allocation2 + $0x4c] sm:$0xf]
    %v193 = vld [vmem:[#allocation2 + $0x50] sm:$0xf]
    %v194 = vld [vmem:[#allocation2 + $0x54] sm:$0xf]
    %v195 = vld [vmem:[#allocation2 + $0x58] sm:$0xf]
    %v196 = vld [vmem:[#allocation2 + $0x5c] sm:$0xf]
    %v197 = vld [vmem:[#allocation2 + $0x60] sm:$0xf]
    %v198 = vld [vmem:[#allocation2 + $0x64] sm:$0xf]
    %v199 = vld [vmem:[#allocation2 + $0x68] sm:$0xf]
    %v200 = vld [vmem:[#allocation2 + $0x6c] sm:$0xf]
    %v201 = vld [vmem:[#allocation2 + $0x70] sm:$0xf]
    %v202 = vld [vmem:[#allocation2 + $0x74] sm:$0xf]
    %v203 = vld [vmem:[#allocation2 + $0x78] sm:$0xf]
    %v204 = vld [vmem:[#allocation2 + $0x7c] sm:$0xf]
    %v205 = vld [vmem:[%s4] sm:$0x1]
    %v207 = vlaneseq
    %v208 = vshrl.u32 %v207, 7
    %v209 = vsub.s32 0, %v208
    %v210 = vrot.slane %v205, %v209
    %v244 = vunpack.c.l.b16 %v173
    %v245 = vunpack.c.l.b16 %v174
    %v246 = vunpack.c.l.b16 %v175
    %v247 = vunpack.c.l.b16 %v176
    %v248 = vunpack.c.l.b16 %v177
    %v249 = vunpack.c.l.b16 %v178
    %v250 = vunpack.c.l.b16 %v179
    %v251 = vunpack.c.l.b16 %v180
    %v252 = vunpack.c.l.b16 %v181
    %v253 = vunpack.c.l.b16 %v182
    %v254 = vunpack.c.l.b16 %v183
    %v255 = vunpack.c.l.b16 %v184
    %v256 = vunpack.c.l.b16 %v185
    %v257 = vunpack.c.l.b16 %v186
    %v258 = vunpack.c.l.b16 %v187
    %v259 = vunpack.c.l.b16 %v188
    %v260 = vunpack.c.l.b16 %v189
    %v261 = vunpack.c.l.b16 %v190
    %v262 = vunpack.c.l.b16 %v191
    %v263 = vunpack.c.l.b16 %v192
    %v264 = vunpack.c.l.b16 %v193
    %v265 = vunpack.c.l.b16 %v194
    %v266 = vunpack.c.l.b16 %v195
    %v267 = vunpack.c.l.b16 %v196
    %v268 = vunpack.c.l.b16 %v197
    %v269 = vunpack.c.l.b16 %v198
    %v270 = vunpack.c.l.b16 %v199
    %v271 = vunpack.c.l.b16 %v200
    %v272 = vunpack.c.l.b16 %v201
    %v273 = vunpack.c.l.b16 %v202
    %v274 = vunpack.c.l.b16 %v203
    %v275 = vunpack.c.l.b16 %v204
    %v276 = vpack.c.b16 %v245, %v244
    %v277 = vpack.c.b16 %v247, %v246
    %v278 = vpack.c.b16 %v249, %v248
    %v279 = vpack.c.b16 %v251, %v250
    %v280 = vpack.c.b16 %v253, %v252
    %v281 = vpack.c.b16 %v255, %v254
    %v282 = vpack.c.b16 %v257, %v256
    %v283 = vpack.c.b16 %v259, %v258
    %v284 = vpack.c.b16 %v261, %v260
    %v285 = vpack.c.b16 %v263, %v262
    %v286 = vpack.c.b16 %v265, %v264
    %v287 = vpack.c.b16 %v267, %v266
    %v288 = vpack.c.b16 %v269, %v268
    %v289 = vpack.c.b16 %v271, %v270
    %v290 = vpack.c.b16 %v273, %v272
    %v291 = vpack.c.b16 %v275, %v274
    %308 = vmatprep.subr.bf16.mxu0 0
    %309 = vmatpush1.bf16.msra.mxu0 %v276
    %310 = vmatprep.subr.bf16.mxu0 0
    %311 = vmatpush1.bf16.msra.mxu0 %v277
    %312 = vmatprep.subr.bf16.mxu0 0
    %313 = vmatpush1.bf16.msra.mxu0 %v278
    %314 = vmatprep.subr.bf16.mxu0 0
    %315 = vmatpush1.bf16.msra.mxu0 %v279
    %316 = vmatprep.subr.bf16.mxu0 0
    %317 = vmatpush1.bf16.msra.mxu0 %v280
    %318 = vmatprep.subr.bf16.mxu0 0
    %319 = vmatpush1.bf16.msra.mxu0 %v281
    %320 = vmatprep.subr.bf16.mxu0 0
    %321 = vmatpush1.bf16.msra.mxu0 %v282
    %322 = vmatprep.subr.bf16.mxu0 0
    %323 = vmatpush1.bf16.msra.mxu0 %v283
    %324 = vmatprep.subr.bf16.mxu0 0
    %325 = vmatpush1.bf16.msra.mxu0 %v284
    %326 = vmatprep.subr.bf16.mxu0 0
    %327 = vmatpush1.bf16.msra.mxu0 %v285
    %328 = vmatprep.subr.bf16.mxu0 0
    %329 = vmatpush1.bf16.msra.mxu0 %v286
    %330 = vmatprep.subr.bf16.mxu0 0
    %331 = vmatpush1.bf16.msra.mxu0 %v287
    %332 = vmatprep.subr.bf16.mxu0 0
    %333 = vmatpush1.bf16.msra.mxu0 %v288
    %334 = vmatprep.subr.bf16.mxu0 0
    %335 = vmatpush1.bf16.msra.mxu0 %v289
    %336 = vmatprep.subr.bf16.mxu0 0
    %337 = vmatpush1.bf16.msra.mxu0 %v290
    %338 = vmatprep.subr.bf16.mxu0 0
    %339 = vmatpush1.bf16.msra.mxu0 %v291
    %340 = vmatprep.mubr.bf16.mxu0 %v172
    %341 = vmatmul.mubr.bf16.gmra.mrb[0].mxu0 %v171
    %v342 = vpop.f32.mrb[0].mxu0
    %v343 = vadd.f32 %v210, %v342
    %v344 = vpop.f32.mrb[0].mxu0
    %v345 = vpop.f32.mrb[0].mxu0
    %v346 = vpop.f32.mrb[0].mxu0
    %347 = vdwg.mxu0
    %v348 = vmax.f32 %v343, 0.0
    %v349 = vpack.c.bf16 %v348, %v348
    %v350 = vld [vmem:[#allocation5] sm:$0xf]
    %v351 = vld [vmem:[#allocation5 + $0x4] sm:$0xf]
    %v352 = vld [vmem:[#allocation5 + $0x8] sm:$0xf]
    %v353 = vld [vmem:[#allocation5 + $0xc] sm:$0xf]
    %v354 = vld [vmem:[#allocation5 + $0x10] sm:$0xf]
    %v355 = vld [vmem:[#allocation5 + $0x14] sm:$0xf]
    %v356 = vld [vmem:[#allocation5 + $0x18] sm:$0xf]
    %v357 = vld [vmem:[#allocation5 + $0x1c] sm:$0xf]
    %v358 = vld [vmem:[#allocation5 + $0x20] sm:$0xf]
    %v359 = vld [vmem:[#allocation5 + $0x24] sm:$0xf]
    %v360 = vld [vmem:[#allocation5 + $0x28] sm:$0xf]
    %v361 = vld [vmem:[#allocation5 + $0x2c] sm:$0xf]
    %v362 = vld [vmem:[#allocation5 + $0x30] sm:$0xf]
    %v363 = vld [vmem:[#allocation5 + $0x34] sm:$0xf]
    %v364 = vld [vmem:[#allocation5 + $0x38] sm:$0xf]
    %v365 = vld [vmem:[#allocation5 + $0x3c] sm:$0xf]
    %v366 = vld [vmem:[%s6] sm:$0x1]
    %v368 = vlaneseq
    %v369 = vshrl.u32 %v368, 7
    %v370 = vsub.s32 0, %v369
    %v371 = vrot.slane %v366, %v370
    %v389 = vunpack.c.l.b16 %v350
    %v390 = vunpack.c.l.b16 %v351
    %v391 = vunpack.c.l.b16 %v352
    %v392 = vunpack.c.l.b16 %v353
    %v393 = vunpack.c.l.b16 %v354
    %v394 = vunpack.c.l.b16 %v355
    %v395 = vunpack.c.l.b16 %v356
    %v396 = vunpack.c.l.b16 %v357
    %v397 = vunpack.c.l.b16 %v358
    %v398 = vunpack.c.l.b16 %v359
    %v399 = vunpack.c.l.b16 %v360
    %v400 = vunpack.c.l.b16 %v361
    %v401 = vunpack.c.l.b16 %v362
    %v402 = vunpack.c.l.b16 %v363
    %v403 = vunpack.c.l.b16 %v364
    %v404 = vunpack.c.l.b16 %v365
    %v405 = vpack.c.b16 %v390, %v389
    %v406 = vpack.c.b16 %v392, %v391
    %v407 = vpack.c.b16 %v394, %v393
    %v408 = vpack.c.b16 %v396, %v395
    %v409 = vpack.c.b16 %v398, %v397
    %v410 = vpack.c.b16 %v400, %v399
    %v411 = vpack.c.b16 %v402, %v401
    %v412 = vpack.c.b16 %v404, %v403
    %421 = vmatprep.subr.bf16.mxu0 0
    %422 = vmatpush1.bf16.msra.mxu0 %v405
    %423 = vmatprep.subr.bf16.mxu0 0
    %424 = vmatpush1.bf16.msra.mxu0 %v406
    %425 = vmatprep.subr.bf16.mxu0 0
    %426 = vmatpush1.bf16.msra.mxu0 %v407
    %427 = vmatprep.subr.bf16.mxu0 0
    %428 = vmatpush1.bf16.msra.mxu0 %v408
    %429 = vmatprep.subr.bf16.mxu0 0
    %430 = vmatpush1.bf16.msra.mxu0 %v409
    %431 = vmatprep.subr.bf16.mxu0 0
    %432 = vmatpush1.bf16.msra.mxu0 %v410
    %433 = vmatprep.subr.bf16.mxu0 0
    %434 = vmatpush1.bf16.msra.mxu0 %v411
    %435 = vmatprep.subr.bf16.mxu0 0
    %436 = vmatpush1.bf16.msra.mxu0 %v412
    %437 = vmatprep.subr.bf16.mxu0 0
    %438 = vmatpush1.bf16.msra.mxu0 0
    %439 = vmatprep.subr.bf16.mxu0 0
    %440 = vmatpush1.bf16.msra.mxu0 0
    %441 = vmatprep.subr.bf16.mxu0 0
    %442 = vmatpush1.bf16.msra.mxu0 0
    %443 = vmatprep.subr.bf16.mxu0 0
    %444 = vmatpush1.bf16.msra.mxu0 0
    %445 = vmatprep.subr.bf16.mxu0 0
    %446 = vmatpush1.bf16.msra.mxu0 0
    %447 = vmatprep.subr.bf16.mxu0 0
    %448 = vmatpush1.bf16.msra.mxu0 0
    %449 = vmatprep.subr.bf16.mxu0 0
    %450 = vmatpush1.bf16.msra.mxu0 0
    %451 = vmatprep.subr.bf16.mxu0 0
    %452 = vmatpush1.bf16.msra.mxu0 0
    %453 = vmatprep.mubr.bf16.mxu0 0
    %454 = vmatmul.mubr.bf16.gmra.mrb[0].mxu0 %v349
    %v455 = vpop.f32.mrb[0].mxu0
    %v456 = vadd.f32 %v371, %v455
    %v457 = vpop.f32.mrb[0].mxu0
    %v458 = vpop.f32.mrb[0].mxu0
    %v459 = vpop.f32.mrb[0].mxu0
    %460 = vdwg.mxu0
    %v461 = vmax.f32 %v456, 0.0
    %v462 = vpack.c.bf16 %v461, %v461
    %v463 = vld [vmem:[%s7] sm:$0xf]
    %v464 = vld [vmem:[%s7 + $0x4] sm:$0xf]
    %v465 = vld [vmem:[%s7 + $0x8] sm:$0xf]
    %v466 = vld [vmem:[%s7 + $0xc] sm:$0xf]
    %v467 = vld [vmem:[%s7 + $0x10] sm:$0xf]
    %v468 = vld [vmem:[%s7 + $0x14] sm:$0xf]
    %v469 = vld [vmem:[%s7 + $0x18] sm:$0xf]
    %v470 = vld [vmem:[%s7 + $0x1c] sm:$0xf]
    %v471 = vld [vmem:[%s7 + $0x20] sm:$0xf]
    %v472 = vld [vmem:[%s7 + $0x24] sm:$0xf]
    %v473 = vld [vmem:[%s7 + $0x28] sm:$0xf]
    %v474 = vld [vmem:[%s7 + $0x2c] sm:$0xf]
    %v475 = vld [vmem:[%s7 + $0x30] sm:$0xf]
    %v476 = vld [vmem:[%s7 + $0x34] sm:$0xf]
    %v477 = vld [vmem:[%s7 + $0x38] sm:$0xf]
    %v478 = vld [vmem:[%s7 + $0x3c] sm:$0xf]
    %v479 = vld [vmem:[%s8] sm:$0x1]
    %v481 = vlaneseq
    %v482 = vshrl.u32 %v481, 7
    %v483 = vsub.s32 0, %v482
    %v484 = vrot.slane %v479, %v483
    %v502 = vunpack.c.l.b16 %v463
    %v503 = vunpack.c.l.b16 %v464
    %v504 = vunpack.c.l.b16 %v465
    %v505 = vunpack.c.l.b16 %v466
    %v506 = vunpack.c.l.b16 %v467
    %v507 = vunpack.c.l.b16 %v468
    %v508 = vunpack.c.l.b16 %v469
    %v509 = vunpack.c.l.b16 %v470
    %v510 = vunpack.c.l.b16 %v471
    %v511 = vunpack.c.l.b16 %v472
    %v512 = vunpack.c.l.b16 %v473
    %v513 = vunpack.c.l.b16 %v474
    %v514 = vunpack.c.l.b16 %v475
    %v515 = vunpack.c.l.b16 %v476
    %v516 = vunpack.c.l.b16 %v477
    %v517 = vunpack.c.l.b16 %v478
    %v518 = vpack.c.b16 %v503, %v502
    %v519 = vpack.c.b16 %v505, %v504
    %v520 = vpack.c.b16 %v507, %v506
    %v521 = vpack.c.b16 %v509, %v508
    %v522 = vpack.c.b16 %v511, %v510
    %v523 = vpack.c.b16 %v513, %v512
    %v524 = vpack.c.b16 %v515, %v514
    %v525 = vpack.c.b16 %v517, %v516
    %534 = vmatprep.subr.bf16.mxu0 0
    %535 = vmatpush1.bf16.msra.mxu0 %v518
    %536 = vmatprep.subr.bf16.mxu0 0
    %537 = vmatpush1.bf16.msra.mxu0 %v519
    %538 = vmatprep.subr.bf16.mxu0 0
    %539 = vmatpush1.bf16.msra.mxu0 %v520
    %540 = vmatprep.subr.bf16.mxu0 0
    %541 = vmatpush1.bf16.msra.mxu0 %v521
    %542 = vmatprep.subr.bf16.mxu0 0
    %543 = vmatpush1.bf16.msra.mxu0 %v522
    %544 = vmatprep.subr.bf16.mxu0 0
    %545 = vmatpush1.bf16.msra.mxu0 %v523
    %546 = vmatprep.subr.bf16.mxu0 0
    %547 = vmatpush1.bf16.msra.mxu0 %v524
    %548 = vmatprep.subr.bf16.mxu0 0
    %549 = vmatpush1.bf16.msra.mxu0 %v525
    %550 = vmatprep.subr.bf16.mxu0 0
    %551 = vmatpush1.bf16.msra.mxu0 0
    %552 = vmatprep.subr.bf16.mxu0 0
    %553 = vmatpush1.bf16.msra.mxu0 0
    %554 = vmatprep.subr.bf16.mxu0 0
    %555 = vmatpush1.bf16.msra.mxu0 0
    %556 = vmatprep.subr.bf16.mxu0 0
    %557 = vmatpush1.bf16.msra.mxu0 0
    %558 = vmatprep.subr.bf16.mxu0 0
    %559 = vmatpush1.bf16.msra.mxu0 0
    %560 = vmatprep.subr.bf16.mxu0 0
    %561 = vmatpush1.bf16.msra.mxu0 0
    %562 = vmatprep.subr.bf16.mxu0 0
    %563 = vmatpush1.bf16.msra.mxu0 0
    %564 = vmatprep.subr.bf16.mxu0 0
    %565 = vmatpush1.bf16.msra.mxu0 0
    %566 = vmatprep.mubr.bf16.mxu0 0
    %567 = vmatmul.mubr.bf16.gmra.mrb[0].mxu0 %v462
    %v568 = vpop.f32.mrb[0].mxu0
    %v569 = vadd.f32 %v484, %v568
    %v570 = vpop.f32.mrb[0].mxu0
    %v571 = vpop.f32.mrb[0].mxu0
    %v572 = vpop.f32.mrb[0].mxu0
    %573 = vdwg.mxu0
    %vm574 = vcmask 261120
    %575 = vst.msk [vmem:[#allocation7] sm:$0xff] %vm574, %v569
    // Predicated region
    $region46: #{tpu_custom_call.1} parent=1 // pred_check
      _
    $region47: #{tpu_custom_call.1} parent=1 // pred_check_branch
      %577 = sbr.rel (0) target = $region49
    $region48: #{tpu_custom_call.1} parent=1 // pred_region
      %s579 = ssub.s32 128, 128
      %580 = vsyncadd [#allocation4], %s579
      %s582 = sshll.u32 [#allocation7], 4
      %s583 = int_to_ptr.vmem [resolvable:$true] %s582
      %585 = dma.vmem_to_hbm [thread:$0]  %s583, 128, %s9, [#allocation4]
    $region49: #{tpu_custom_call.1} parent=1 // pred_fallthru
      _
    // Predicated region
    $region50: #{tpu_custom_call.1} parent=1 // pred_check
      _
    $region51: #{tpu_custom_call.1} parent=1 // pred_check_branch
      %587 = sbr.rel (0) target = $region53
    $region52: #{tpu_custom_call.1} parent=1 // pred_region
      %588 = dma.done [#allocation4], 128
    $region53: #{tpu_custom_call.1} parent=1 // pred_fallthru
      _
    %589 = vsyncpa [#allocation3], 1
    %590 = vsyncpa [#allocation6], 1
    %591 = vsyncpa [#allocation4], 1

</llo_original>
